<compile_context>
chip_gen: v7x
topology: tpu7x:2x2x1
jax: 0.10.0
libtpu: 0.0.40
codegen_flags: <defaults>
</compile_context>

<pallas_src>
import functools
import numpy as np

import jax
import jax.numpy as jnp
from jax import lax
from jax.experimental import pallas as pl
from jax.experimental.pallas import tpu as pltpu


# ----------------------------- synthetic cfg --------------------------------
class _cfg_train:
    RPN_NEGATIVE_OVERLAP = 0.3
    RPN_POSITIVE_OVERLAP = 0.7
    RPN_CLOBBER_POSITIVES = False
    RPN_FG_FRACTION = 0.5
    RPN_BATCHSIZE = 256
    RPN_BBOX_INSIDE_WEIGHTS = (1.0, 1.0, 1.0, 1.0)
    RPN_POSITIVE_WEIGHT = -1.0


class cfg:
    TRAIN = _cfg_train
    # small scales/strides so the synthetic test has in-image anchors
    FPN_ANCHOR_SCALES = [8, 16, 32]
    FPN_FEAT_STRIDES = [4, 8, 16]
    FPN_ANCHOR_STRIDE = 1


# ----------------------- anchor generation (host, numpy) --------------------
def generate_anchors_single_pyramid(scales, ratios, shape, feature_stride, anchor_stride):
    scales, ratios = np.meshgrid(np.array(scales), np.array(ratios))
    scales = scales.flatten()
    ratios = ratios.flatten()
    heights = scales / np.sqrt(ratios)
    widths = scales * np.sqrt(ratios)
    shifts_y = np.arange(0, shape[0], anchor_stride) * feature_stride
    shifts_x = np.arange(0, shape[1], anchor_stride) * feature_stride
    shifts_x, shifts_y = np.meshgrid(shifts_x, shifts_y)
    box_widths, box_centers_x = np.meshgrid(widths, shifts_x)
    box_heights, box_centers_y = np.meshgrid(heights, shifts_y)
    box_centers = np.stack([box_centers_x, box_centers_y], axis=2).reshape([-1, 2])
    box_sizes = np.stack([box_widths, box_heights], axis=2).reshape([-1, 2])
    boxes = np.concatenate([box_centers - 0.5 * box_sizes,
                            box_centers + 0.5 * box_sizes], axis=1)
    return boxes


def generate_anchors_all_pyramids(scales, ratios, feature_shapes, feature_strides, anchor_stride):
    anchors = []
    for i in range(len(scales)):
        anchors.append(generate_anchors_single_pyramid(
            scales[i], ratios, feature_shapes[i], feature_strides[i], anchor_stride))
    return np.concatenate(anchors, axis=0)


# --------------------------- shared kernel helpers ---------------------------
def _anchor_geom(anchors_ref, im_ref):
    """Per-tile anchor geometry; anchors are packed (4, TS, 128) slabs."""
    ax1 = anchors_ref[0]                      # (TS, 128)
    ay1 = anchors_ref[1]
    ax2 = anchors_ref[2]
    ay2 = anchors_ref[3]
    im_h = im_ref[0]                          # already floor()'d on the host
    im_w = im_ref[1]
    # inside-image mask (allowed_border == 0)
    inside = (ax1 >= 0.0) & (ay1 >= 0.0) & (ax2 < im_w) & (ay2 < im_h)
    aw = ax2 - ax1 + 1.0
    ah = ay2 - ay1 + 1.0
    a_area = aw * ah
    a_zero = (aw == 1.0) & (ah == 1.0)
    return ax1, ay1, ax2, ay2, aw, ah, a_area, a_zero, inside


def _gt_scalars(gt_ref, b, k, K):
    """Scalar reads of one gt box from the flattened (B*K*5,) SMEM array."""
    base = (b * K + k) * 5
    gx1 = gt_ref[base + 0]
    gy1 = gt_ref[base + 1]
    gx2 = gt_ref[base + 2]
    gy2 = gt_ref[base + 3]
    gw = gx2 - gx1 + 1.0
    gh = gy2 - gy1 + 1.0
    garea = gw * gh
    gzero = (gw == 1.0) & (gh == 1.0)
    return gx1, gy1, gx2, gy2, gw, gh, garea, gzero


def _iou(ax1, ay1, ax2, ay2, a_area, a_zero,
         gx1, gy1, gx2, gy2, garea, gzero):
    """IOU of every anchor in the tile against one gt box.

    Kept bit-identical between the two kernels: the finalize kernel compares
    these values for exact float equality against the per-gt maxima.  Do not
    re-associate or replace the division with an approximate reciprocal.
    """
    iw = jnp.minimum(ax2, gx2) - jnp.maximum(ax1, gx1) + 1.0
    iw = jnp.maximum(iw, 0.0)
    ih = jnp.minimum(ay2, gy2) - jnp.maximum(ay1, gy1) + 1.0
    ih = jnp.maximum(ih, 0.0)
    inter = iw * ih
    ua = a_area + garea - inter
    ov = inter / ua
    ov = jnp.where(gzero, 0.0, ov)     # zero-padded gt box -> overlap 0
    ov = jnp.where(a_zero, -1.0, ov)   # degenerate anchor  -> overlap -1
    return ov


# --------------------- kernel A: per-gt max over inside anchors --------------
def _gtmax_kernel(im_ref, gt_ref, anchors_ref, gtmax_ref, *, B, K):
    t = pl.program_id(0)

    @pl.when(t == 0)
    def _init():
        gtmax_ref[...] = jnp.full(gtmax_ref.shape, -1e30, jnp.float32)

    ax1, ay1, ax2, ay2, _aw, _ah, a_area, a_zero, inside = _anchor_geom(anchors_ref, im_ref)

    neg = jnp.float32(-1e30)
    bidx = lax.broadcasted_iota(jnp.int32, (B, K), 0)
    kidx = lax.broadcasted_iota(jnp.int32, (B, K), 1)
    tile_max = jnp.full((B, K), -1e30, jnp.float32)

    # Light pass: per-gt max IOU over inside anchors only (no argmax/keep work).
    for b in range(B):
        for k in range(K):
            gx1, gy1, gx2, gy2, _gw, _gh, garea, gzero = _gt_scalars(gt_ref, b, k, K)
            ov = _iou(ax1, ay1, ax2, ay2, a_area, a_zero,
                      gx1, gy1, gx2, gy2, garea, gzero)
            m = jnp.max(jnp.where(inside, ov, neg), axis=1, keepdims=True)   # (TS, 1)
            m = jnp.max(m, axis=0, keepdims=True)                            # (1, 1)
            tile_max = jnp.where((bidx == b) & (kidx == k), m, tile_max)

    gtmax_ref[...] = jnp.maximum(gtmax_ref[...], tile_max)


# ------------- kernel B: labels / inside weights / bbox targets per tile -----
def _finalize_kernel(im_ref, gt_ref, gtmax_ref, anchors_ref,
                     labels_ref, inw_ref, dx_ref, dy_ref, dw_ref, dh_ref,
                     *, B, K, neg_ov, pos_ov, inside_w):
    ax1, ay1, ax2, ay2, aw, ah, a_area, a_zero, inside = _anchor_geom(anchors_ref, im_ref)
    ex_cx = ax1 + 0.5 * aw
    ex_cy = ay1 + 0.5 * ah

    for b in range(B):
        best_ov = None
        keep_any = None
        sel_gcx = sel_gcy = sel_gw = sel_gh = None
        for k in range(K):
            gx1, gy1, _gx2, _gy2, gw, gh, garea, gzero = _gt_scalars(gt_ref, b, k, K)
            ov = _iou(ax1, ay1, ax2, ay2, a_area, a_zero,
                      gx1, gy1, _gx2, _gy2, garea, gzero)
            gcx = gx1 + 0.5 * gw                      # scalar per gt box
            gcy = gy1 + 0.5 * gh
            keep_k = ov == gtmax_ref[b * K + k]       # exact tie with per-gt max
            if k == 0:
                best_ov = ov
                keep_any = keep_k
                sel_gcx = jnp.broadcast_to(gcx, ov.shape)
                sel_gcy = jnp.broadcast_to(gcy, ov.shape)
                sel_gw = jnp.broadcast_to(gw, ov.shape)
                sel_gh = jnp.broadcast_to(gh, ov.shape)
            else:
                keep_any = keep_any | keep_k
                upd = ov > best_ov                    # strict '>' -> first argmax on ties
                best_ov = jnp.where(upd, ov, best_ov)
                sel_gcx = jnp.where(upd, gcx, sel_gcx)
                sel_gcy = jnp.where(upd, gcy, sel_gcy)
                sel_gw = jnp.where(upd, gw, sel_gw)
                sel_gh = jnp.where(upd, gh, sel_gh)

        labels = jnp.full_like(best_ov, -1.0)
        labels = jnp.where(best_ov < neg_ov, 0.0, labels)   # RPN_CLOBBER_POSITIVES=False
        labels = jnp.where(keep_any, 1.0, labels)
        labels = jnp.where(best_ov >= pos_ov, 1.0, labels)
        # TODO(synk): fg/bg random subsampling (np.random.permutation) is skipped;
        # at these anchor counts (< RPN_BATCHSIZE fractions) it is a no-op.

        inw = jnp.where(labels == 1.0, inside_w, 0.0)

        # bbox regression targets vs. the argmax gt box
        dx = (sel_gcx - ex_cx) / aw
        dy = (sel_gcy - ex_cy) / ah
        dw = jnp.log(sel_gw / aw)
        dh = jnp.log(sel_gh / ah)

        # "_unmap": outside-image anchors take the fill values (-1 / 0)
        labels_ref[b] = jnp.where(inside, labels, -1.0)
        inw_ref[b] = jnp.where(inside, inw, 0.0)
        dx_ref[b] = jnp.where(inside, dx, 0.0)
        dy_ref[b] = jnp.where(inside, dy, 0.0)
        dw_ref[b] = jnp.where(inside, dw, 0.0)
        dh_ref[b] = jnp.where(inside, dh, 0.0)


# ------------------------------- wrapper module ------------------------------
class AnchorTargetLayerFPNPallas:
    def __init__(self, feat_stride, scales, ratios):
        self._anchor_ratios = np.array(ratios, dtype=np.float64)
        self._feat_stride = feat_stride
        self._fpn_scales = np.array(cfg.FPN_ANCHOR_SCALES)
        self._fpn_feature_strides = np.array(cfg.FPN_FEAT_STRIDES)
        self._fpn_anchor_stride = cfg.FPN_ANCHOR_STRIDE
        self._allowed_border = 0

    def forward(self, inputs):
        scores, gt_boxes, im_info, num_boxes, feat_shapes = inputs
        del scores, num_boxes  # only dtype of scores matters in the reference
        # TODO(synk): outputs are kept in float32 (reference follows scores/gt dtype).

        anchors_np = generate_anchors_all_pyramids(
            self._fpn_scales, self._anchor_ratios, feat_shapes,
            self._fpn_feature_strides, self._fpn_anchor_stride).astype(np.float32)
        total_anchors = anchors_np.shape[0]

        gt_boxes = jnp.asarray(gt_boxes, dtype=jnp.float32)
        B, K, _ = gt_boxes.shape

        # anchor tile: multiple of 1024 so each per-image slab packs full vregs
        # (TS = TN//128 sublanes).  2048 keeps vreg pressure low at real counts.
        TN = 2048 if total_anchors > 1024 else 1024
        Np = ((total_anchors + TN - 1) // TN) * TN
        T = Np // TN
        TS = TN // 128
        S = Np // 128

        # pad anchor axis with degenerate far-outside boxes; masked inside kernels.
        pad = np.full((Np - total_anchors, 4), -1e5, dtype=np.float32)
        anchors_pad = np.concatenate([anchors_np, pad], axis=0)          # (Np, 4)
        anchors_packed = jnp.asarray(anchors_pad.T.reshape(4, S, 128))   # (4, S, 128)

        # scalar inputs, flattened to 1-D SMEM arrays
        im_hw = jnp.floor(jnp.asarray(im_info, dtype=jnp.float32)[0, 0:2])  # [h, w]
        gt_flat = gt_boxes.reshape(-1)                                      # (B*K*5,)

        smem = pl.BlockSpec(memory_space=pltpu.MemorySpace.SMEM)

        # ---------- call A: per-gt max overlap over inside anchors ----------
        gt_max = pl.pallas_call(
            functools.partial(_gtmax_kernel, B=B, K=K),
            out_shape=jax.ShapeDtypeStruct((B, K), jnp.float32),
            grid=(T,),
            in_specs=[
                smem,                                             # im [h, w]
                smem,                                             # gt flat
                pl.BlockSpec((4, TS, 128), lambda t: (0, t, 0)),  # anchors tile
            ],
            out_specs=pl.BlockSpec((B, K), lambda t: (0, 0)),     # resident accumulator
            compiler_params=pltpu.CompilerParams(
                dimension_semantics=("arbitrary",)),
        )(im_hw, gt_flat, anchors_packed)

        # gt_max_overlaps[gt_max_overlaps == 0] = 1e-5 (reference), then flatten
        gt_max_adj = jnp.where(gt_max == 0.0, jnp.float32(1e-5), gt_max).reshape(-1)

        # ---------- call B: labels / targets / inside weights per tile ------
        out_sds = jax.ShapeDtypeStruct((B, S, 128), jnp.float32)
        out_spec = pl.BlockSpec((B, TS, 128), lambda t: (0, t, 0))

        labels_p, inw_p, dx_p, dy_p, dw_p, dh_p = pl.pallas_call(
            functools.partial(
                _finalize_kernel, B=B, K=K,
                neg_ov=float(cfg.TRAIN.RPN_NEGATIVE_OVERLAP),
                pos_ov=float(cfg.TRAIN.RPN_POSITIVE_OVERLAP),
                inside_w=float(cfg.TRAIN.RPN_BBOX_INSIDE_WEIGHTS[0])),
            out_shape=(out_sds,) * 6,
            grid=(T,),
            in_specs=[
                smem,                                             # im [h, w]
                smem,                                             # gt flat
                smem,                                             # gt_max_adj flat
                pl.BlockSpec((4, TS, 128), lambda t: (0, t, 0)),  # anchors tile
            ],
            out_specs=(out_spec,) * 6,
            # tiles are independent -> both TensorCores on v7x
            compiler_params=pltpu.CompilerParams(
                dimension_semantics=("parallel",)),
        )(im_hw, gt_flat, gt_max_adj, anchors_packed)

        labels = labels_p.reshape(B, Np)
        inw = inw_p.reshape(B, Np)
        targets = jnp.stack([dx_p.reshape(B, Np), dy_p.reshape(B, Np),
                             dw_p.reshape(B, Np), dh_p.reshape(B, Np)], axis=2)

        # outside weights from unmapped labels (reference: num_examples counted
        # from the LAST batch image only, reproducing the leftover loop index).
        num_examples = jnp.sum((labels[B - 1] >= 0.0).astype(jnp.float32))
        # clamp guards against 1/0 when the last image has no labeled inside anchor
        w = 1.0 / jnp.maximum(num_examples, 1.0)
        outw = jnp.where(labels >= 0.0, w, 0.0)

        # drop the padded anchors -> exact reference output shapes
        return [labels[:, :total_anchors],
                targets[:, :total_anchors, :],
                inw[:, :total_anchors],
                outw[:, :total_anchors]]


# ----------------------------------- main ------------------------------------
if __name__ == "__main__":
    key = jax.random.PRNGKey(0)
    B, K = 2, 8
    feat_shapes = [(8, 8), (4, 4), (2, 2)]

    layer = AnchorTargetLayerFPNPallas(feat_stride=cfg.FPN_FEAT_STRIDES,
                                       scales=cfg.FPN_ANCHOR_SCALES,
                                       ratios=[0.5, 1.0, 2.0])

    k1, k2, k3 = jax.random.split(key, 3)
    x1 = jax.random.uniform(k1, (B, K), minval=0.0, maxval=18.0)
    y1 = jax.random.uniform(k2, (B, K), minval=0.0, maxval=18.0)
    wh = jax.random.uniform(k3, (B, K, 2), minval=3.0, maxval=12.0)
    x2 = jnp.minimum(x1 + wh[..., 0], 31.0)
    y2 = jnp.minimum(y1 + wh[..., 1], 31.0)
    cls = jnp.ones((B, K))
    gt_boxes = jnp.stack([x1, y1, x2, y2, cls], axis=2).astype(jnp.float32)
    # emulate gt padding: zero out the last 2 boxes per image
    pad_mask = (jnp.arange(K) < K - 2).astype(jnp.float32)[None, :, None]
    gt_boxes = gt_boxes * pad_mask

    im_info = jnp.array([[32.0, 32.0, 1.0]] * B, dtype=jnp.float32)
    num_boxes = jnp.array([K - 2] * B, dtype=jnp.int32)
    # scores is NCHW (B, 2*num_ratios, H, W) as in PyTorch; only dtype matters.
    scores = jax.random.normal(jax.random.PRNGKey(1), (B, 2 * 3, 8, 8), dtype=jnp.float32)

    outs = layer.forward([scores, gt_boxes, im_info, num_boxes, feat_shapes])
    for o in outs:
        jax.block_until_ready(o)
    print("KERNEL_OK")
</pallas_src>

<mosaic_0001>
module attributes {stable_mosaic.version = 11 : i64} {
  func.func @_gtmax_kernel(%arg0: i32, %arg1: memref<2xf32, #tpu.memory_space<smem>>, %arg2: memref<80xf32, #tpu.memory_space<smem>>, %arg3: memref<4x8x128xf32, #tpu.memory_space<vmem>>, %arg4: memref<2x8xf32, #tpu.memory_space<vmem>>) attributes {dimension_semantics = [#tpu.dimension_semantics<arbitrary>], iteration_bounds = array<i64: 1>, scalar_prefetch = 0 : i64, scratch_operands = 0 : i64, tpu.core_type = #tpu.core_type<tc>, window_params = [{transform_indices = @transform_0, window_bounds = array<i64: 2>}, {transform_indices = @transform_1, window_bounds = array<i64: 80>}, {transform_indices = @transform_2, window_bounds = array<i64: 4, 8, 128>}, {pipeline_mode = #tpu.pipeline_mode<synchronous>, transform_indices = @transform_3, window_bounds = array<i64: 2, 8>}]} {
    %c0_i32 = arith.constant 0 : i32
    %0 = arith.cmpi eq, %arg0, %c0_i32 : i32
    %1 = arith.extui %0 : i1 to i32
    %c0_i32_0 = arith.constant 0 : i32
    %2 = arith.cmpi ne, %1, %c0_i32_0 : i32
    scf.if %2 {
      %cst_258 = arith.constant -1.000000e+30 : f32
      %890 = vector.broadcast %cst_258 : f32 to vector<2x8xf32>
      %c0_259 = arith.constant 0 : index
      %c0_260 = arith.constant 0 : index
      %891 = vector.load %arg4[%c0_259, %c0_260] : memref<2x8xf32, #tpu.memory_space<vmem>>, vector<2x8xf32>
      tpu.vector_store %arg4[%c0_259, %c0_260], %890 {strides = array<i32>} : memref<2x8xf32, #tpu.memory_space<vmem>>, vector<2x8xf32>,
    } else {
    }
    %c0 = arith.constant 0 : index
    %c0_1 = arith.constant 0 : index
    %c0_2 = arith.constant 0 : index
    %3 = vector.load %arg3[%c0, %c0_1, %c0_2] : memref<4x8x128xf32, #tpu.memory_space<vmem>>, vector<1x8x128xf32>
    %4 = vector.shape_cast %3 : vector<1x8x128xf32> to vector<8x128xf32>
    %c1 = arith.constant 1 : index
    %c0_3 = arith.constant 0 : index
    %c0_4 = arith.constant 0 : index
    %5 = vector.load %arg3[%c1, %c0_3, %c0_4] : memref<4x8x128xf32, #tpu.memory_space<vmem>>, vector<1x8x128xf32>
    %6 = vector.shape_cast %5 : vector<1x8x128xf32> to vector<8x128xf32>
    %c2 = arith.constant 2 : index
    %c0_5 = arith.constant 0 : index
    %c0_6 = arith.constant 0 : index
    %7 = vector.load %arg3[%c2, %c0_5, %c0_6] : memref<4x8x128xf32, #tpu.memory_space<vmem>>, vector<1x8x128xf32>
    %8 = vector.shape_cast %7 : vector<1x8x128xf32> to vector<8x128xf32>
    %c3 = arith.constant 3 : index
    %c0_7 = arith.constant 0 : index
    %c0_8 = arith.constant 0 : index
    %9 = vector.load %arg3[%c3, %c0_7, %c0_8] : memref<4x8x128xf32, #tpu.memory_space<vmem>>, vector<1x8x128xf32>
    %10 = vector.shape_cast %9 : vector<1x8x128xf32> to vector<8x128xf32>
    %c0_9 = arith.constant 0 : index
    %11 = memref.load %arg1[%c0_9] : memref<2xf32, #tpu.memory_space<smem>>
    %c1_10 = arith.constant 1 : index
    %12 = memref.load %arg1[%c1_10] : memref<2xf32, #tpu.memory_space<smem>>
    %cst = arith.constant 0.000000e+00 : f32
    %13 = vector.broadcast %cst : f32 to vector<8x128xf32>
    %14 = arith.cmpf oge, %4, %13 : vector<8x128xf32>
    %cst_11 = arith.constant 0.000000e+00 : f32
    %15 = vector.broadcast %cst_11 : f32 to vector<8x128xf32>
    %16 = arith.cmpf oge, %6, %15 : vector<8x128xf32>
    %17 = arith.andi %14, %16 : vector<8x128xi1>
    %18 = vector.broadcast %12 : f32 to vector<8x128xf32>
    %19 = arith.cmpf olt, %8, %18 : vector<8x128xf32>
    %20 = arith.andi %17, %19 : vector<8x128xi1>
    %21 = vector.broadcast %11 : f32 to vector<8x128xf32>
    %22 = arith.cmpf olt, %10, %21 : vector<8x128xf32>
    %23 = arith.andi %20, %22 : vector<8x128xi1>
    %24 = arith.subf %8, %4 : vector<8x128xf32>
    %cst_12 = arith.constant 1.000000e+00 : f32
    %25 = vector.broadcast %cst_12 : f32 to vector<8x128xf32>
    %26 = arith.addf %24, %25 : vector<8x128xf32>
    %27 = arith.subf %10, %6 : vector<8x128xf32>
    %cst_13 = arith.constant 1.000000e+00 : f32
    %28 = vector.broadcast %cst_13 : f32 to vector<8x128xf32>
    %29 = arith.addf %27, %28 : vector<8x128xf32>
    %30 = arith.mulf %26, %29 : vector<8x128xf32>
    %cst_14 = arith.constant 1.000000e+00 : f32
    %31 = vector.broadcast %cst_14 : f32 to vector<8x128xf32>
    %32 = arith.cmpf oeq, %26, %31 : vector<8x128xf32>
    %cst_15 = arith.constant 1.000000e+00 : f32
    %33 = vector.broadcast %cst_15 : f32 to vector<8x128xf32>
    %34 = arith.cmpf oeq, %29, %33 : vector<8x128xf32>
    %35 = arith.andi %32, %34 : vector<8x128xi1>
    %36 = tpu.iota {dimensions = array<i32: 0>} : vector<2x8xi32>
    %37 = tpu.iota {dimensions = array<i32: 1>} : vector<2x8xi32>
    %cst_16 = arith.constant -1.000000e+30 : f32
    %38 = vector.broadcast %cst_16 : f32 to vector<2x8xf32>
    %c0_17 = arith.constant 0 : index
    %39 = memref.load %arg2[%c0_17] : memref<80xf32, #tpu.memory_space<smem>>
    %c1_18 = arith.constant 1 : index
    %40 = memref.load %arg2[%c1_18] : memref<80xf32, #tpu.memory_space<smem>>
    %c2_19 = arith.constant 2 : index
    %41 = memref.load %arg2[%c2_19] : memref<80xf32, #tpu.memory_space<smem>>
    %c3_20 = arith.constant 3 : index
    %42 = memref.load %arg2[%c3_20] : memref<80xf32, #tpu.memory_space<smem>>
    %43 = arith.subf %41, %39 : f32
    %cst_21 = arith.constant 1.000000e+00 : f32
    %44 = arith.addf %43, %cst_21 : f32
    %45 = arith.subf %42, %40 : f32
    %cst_22 = arith.constant 1.000000e+00 : f32
    %46 = arith.addf %45, %cst_22 : f32
    %47 = arith.mulf %44, %46 : f32
    %cst_23 = arith.constant 1.000000e+00 : f32
    %48 = arith.cmpf oeq, %44, %cst_23 : f32
    %cst_24 = arith.constant 1.000000e+00 : f32
    %49 = arith.cmpf oeq, %46, %cst_24 : f32
    %50 = arith.andi %48, %49 : i1
    %51 = vector.broadcast %41 : f32 to vector<8x128xf32>
    %52 = arith.minimumf %8, %51 : vector<8x128xf32>
    %53 = vector.broadcast %39 : f32 to vector<8x128xf32>
    %54 = arith.maximumf %4, %53 : vector<8x128xf32>
    %55 = arith.subf %52, %54 : vector<8x128xf32>
    %cst_25 = arith.constant 1.000000e+00 : f32
    %56 = vector.broadcast %cst_25 : f32 to vector<8x128xf32>
    %57 = arith.addf %55, %56 : vector<8x128xf32>
    %cst_26 = arith.constant 0.000000e+00 : f32
    %58 = vector.broadcast %cst_26 : f32 to vector<8x128xf32>
    %59 = arith.maximumf %57, %58 : vector<8x128xf32>
    %60 = vector.broadcast %42 : f32 to vector<8x128xf32>
    %61 = arith.minimumf %10, %60 : vector<8x128xf32>
    %62 = vector.broadcast %40 : f32 to vector<8x128xf32>
    %63 = arith.maximumf %6, %62 : vector<8x128xf32>
    %64 = arith.subf %61, %63 : vector<8x128xf32>
    %cst_27 = arith.constant 1.000000e+00 : f32
    %65 = vector.broadcast %cst_27 : f32 to vector<8x128xf32>
    %66 = arith.addf %64, %65 : vector<8x128xf32>
    %cst_28 = arith.constant 0.000000e+00 : f32
    %67 = vector.broadcast %cst_28 : f32 to vector<8x128xf32>
    %68 = arith.maximumf %66, %67 : vector<8x128xf32>
    %69 = arith.mulf %59, %68 : vector<8x128xf32>
    %70 = vector.broadcast %47 : f32 to vector<8x128xf32>
    %71 = arith.addf %30, %70 : vector<8x128xf32>
    %72 = arith.subf %71, %69 : vector<8x128xf32>
    %73 = arith.divf %69, %72 : vector<8x128xf32>
    %cst_29 = arith.constant 0.000000e+00 : f32
    %74 = vector.broadcast %cst_29 : f32 to vector<8x128xf32>
    %75 = arith.select %50, %74, %73 : vector<8x128xf32>
    %cst_30 = arith.constant -1.000000e+00 : f32
    %76 = vector.broadcast %cst_30 : f32 to vector<8x128xf32>
    %77 = arith.select %35, %76, %75 : vector<8x128xi1>, vector<8x128xf32>
    %cst_31 = arith.constant -1.000000e+30 : f32
    %78 = vector.broadcast %cst_31 : f32 to vector<8x128xf32>
    %79 = arith.select %23, %77, %78 : vector<8x128xi1>, vector<8x128xf32>
    %cst_32 = arith.constant dense<0xFF800000> : vector<8xf32>
    %80 = vector.multi_reduction <maximumf>, %79, %cst_32 [1] : vector<8x128xf32> to vector<8xf32>
    %81 = vector.shape_cast %80 : vector<8xf32> to vector<8x1xf32>
    %cst_33 = arith.constant dense<0xFF800000> : vector<1xf32>
    %82 = vector.multi_reduction <maximumf>, %81, %cst_33 [0] : vector<8x1xf32> to vector<1xf32>
    %83 = vector.shape_cast %82 : vector<1xf32> to vector<1x1xf32>
    %c0_i32_34 = arith.constant 0 : i32
    %84 = vector.broadcast %c0_i32_34 : i32 to vector<2x8xi32>
    %85 = arith.cmpi eq, %36, %84 : vector<2x8xi32>
    %c0_i32_35 = arith.constant 0 : i32
    %86 = vector.broadcast %c0_i32_35 : i32 to vector<2x8xi32>
    %87 = arith.cmpi eq, %37, %86 : vector<2x8xi32>
    %88 = arith.andi %85, %87 : vector<2x8xi1>
    %89 = vector.shape_cast %83 : vector<1x1xf32> to vector<1x1xf32>
    %90 = vector.broadcast %89 : vector<1x1xf32> to vector<2x8xf32>
    %91 = arith.select %88, %90, %38 : vector<2x8xi1>, vector<2x8xf32>
    %c5 = arith.constant 5 : index
    %92 = memref.load %arg2[%c5] : memref<80xf32, #tpu.memory_space<smem>>
    %c6 = arith.constant 6 : index
    %93 = memref.load %arg2[%c6] : memref<80xf32, #tpu.memory_space<smem>>
    %c7 = arith.constant 7 : index
    %94 = memref.load %arg2[%c7] : memref<80xf32, #tpu.memory_space<smem>>
    %c8 = arith.constant 8 : index
    %95 = memref.load %arg2[%c8] : memref<80xf32, #tpu.memory_space<smem>>
    %96 = arith.subf %94, %92 : f32
    %cst_36 = arith.constant 1.000000e+00 : f32
    %97 = arith.addf %96, %cst_36 : f32
    %98 = arith.subf %95, %93 : f32
    %cst_37 = arith.constant 1.000000e+00 : f32
    %99 = arith.addf %98, %cst_37 : f32
    %100 = arith.mulf %97, %99 : f32
    %cst_38 = arith.constant 1.000000e+00 : f32
    %101 = arith.cmpf oeq, %97, %cst_38 : f32
    %cst_39 = arith.constant 1.000000e+00 : f32
    %102 = arith.cmpf oeq, %99, %cst_39 : f32
    %103 = arith.andi %101, %102 : i1
    %104 = vector.broadcast %94 : f32 to vector<8x128xf32>
    %105 = arith.minimumf %8, %104 : vector<8x128xf32>
    %106 = vector.broadcast %92 : f32 to vector<8x128xf32>
    %107 = arith.maximumf %4, %106 : vector<8x128xf32>
    %108 = arith.subf %105, %107 : vector<8x128xf32>
    %cst_40 = arith.constant 1.000000e+00 : f32
    %109 = vector.broadcast %cst_40 : f32 to vector<8x128xf32>
    %110 = arith.addf %108, %109 : vector<8x128xf32>
    %cst_41 = arith.constant 0.000000e+00 : f32
    %111 = vector.broadcast %cst_41 : f32 to vector<8x128xf32>
    %112 = arith.maximumf %110, %111 : vector<8x128xf32>
    %113 = vector.broadcast %95 : f32 to vector<8x128xf32>
    %114 = arith.minimumf %10, %113 : vector<8x128xf32>
    %115 = vector.broadcast %93 : f32 to vector<8x128xf32>
    %116 = arith.maximumf %6, %115 : vector<8x128xf32>
    %117 = arith.subf %114, %116 : vector<8x128xf32>
    %cst_42 = arith.constant 1.000000e+00 : f32
    %118 = vector.broadcast %cst_42 : f32 to vector<8x128xf32>
    %119 = arith.addf %117, %118 : vector<8x128xf32>
    %cst_43 = arith.constant 0.000000e+00 : f32
    %120 = vector.broadcast %cst_43 : f32 to vector<8x128xf32>
    %121 = arith.maximumf %119, %120 : vector<8x128xf32>
    %122 = arith.mulf %112, %121 : vector<8x128xf32>
    %123 = vector.broadcast %100 : f32 to vector<8x128xf32>
    %124 = arith.addf %30, %123 : vector<8x128xf32>
    %125 = arith.subf %124, %122 : vector<8x128xf32>
    %126 = arith.divf %122, %125 : vector<8x128xf32>
    %cst_44 = arith.constant 0.000000e+00 : f32
    %127 = vector.broadcast %cst_44 : f32 to vector<8x128xf32>
    %128 = arith.select %103, %127, %126 : vector<8x128xf32>
    %cst_45 = arith.constant -1.000000e+00 : f32
    %129 = vector.broadcast %cst_45 : f32 to vector<8x128xf32>
    %130 = arith.select %35, %129, %128 : vector<8x128xi1>, vector<8x128xf32>
    %cst_46 = arith.constant -1.000000e+30 : f32
    %131 = vector.broadcast %cst_46 : f32 to vector<8x128xf32>
    %132 = arith.select %23, %130, %131 : vector<8x128xi1>, vector<8x128xf32>
    %cst_47 = arith.constant dense<0xFF800000> : vector<8xf32>
    %133 = vector.multi_reduction <maximumf>, %132, %cst_47 [1] : vector<8x128xf32> to vector<8xf32>
    %134 = vector.shape_cast %133 : vector<8xf32> to vector<8x1xf32>
    %cst_48 = arith.constant dense<0xFF800000> : vector<1xf32>
    %135 = vector.multi_reduction <maximumf>, %134, %cst_48 [0] : vector<8x1xf32> to vector<1xf32>
    %136 = vector.shape_cast %135 : vector<1xf32> to vector<1x1xf32>
    %c0_i32_49 = arith.constant 0 : i32
    %137 = vector.broadcast %c0_i32_49 : i32 to vector<2x8xi32>
    %138 = arith.cmpi eq, %36, %137 : vector<2x8xi32>
    %c1_i32 = arith.constant 1 : i32
    %139 = vector.broadcast %c1_i32 : i32 to vector<2x8xi32>
    %140 = arith.cmpi eq, %37, %139 : vector<2x8xi32>
    %141 = arith.andi %138, %140 : vector<2x8xi1>
    %142 = vector.shape_cast %136 : vector<1x1xf32> to vector<1x1xf32>
    %143 = vector.broadcast %142 : vector<1x1xf32> to vector<2x8xf32>
    %144 = arith.select %141, %143, %91 : vector<2x8xi1>, vector<2x8xf32>
    %c10 = arith.constant 10 : index
    %145 = memref.load %arg2[%c10] : memref<80xf32, #tpu.memory_space<smem>>
    %c11 = arith.constant 11 : index
    %146 = memref.load %arg2[%c11] : memref<80xf32, #tpu.memory_space<smem>>
    %c12 = arith.constant 12 : index
    %147 = memref.load %arg2[%c12] : memref<80xf32, #tpu.memory_space<smem>>
    %c13 = arith.constant 13 : index
    %148 = memref.load %arg2[%c13] : memref<80xf32, #tpu.memory_space<smem>>
    %149 = arith.subf %147, %145 : f32
    %cst_50 = arith.constant 1.000000e+00 : f32
    %150 = arith.addf %149, %cst_50 : f32
    %151 = arith.subf %148, %146 : f32
    %cst_51 = arith.constant 1.000000e+00 : f32
    %152 = arith.addf %151, %cst_51 : f32
    %153 = arith.mulf %150, %152 : f32
    %cst_52 = arith.constant 1.000000e+00 : f32
    %154 = arith.cmpf oeq, %150, %cst_52 : f32
    %cst_53 = arith.constant 1.000000e+00 : f32
    %155 = arith.cmpf oeq, %152, %cst_53 : f32
    %156 = arith.andi %154, %155 : i1
    %157 = vector.broadcast %147 : f32 to vector<8x128xf32>
    %158 = arith.minimumf %8, %157 : vector<8x128xf32>
    %159 = vector.broadcast %145 : f32 to vector<8x128xf32>
    %160 = arith.maximumf %4, %159 : vector<8x128xf32>
    %161 = arith.subf %158, %160 : vector<8x128xf32>
    %cst_54 = arith.constant 1.000000e+00 : f32
    %162 = vector.broadcast %cst_54 : f32 to vector<8x128xf32>
    %163 = arith.addf %161, %162 : vector<8x128xf32>
    %cst_55 = arith.constant 0.000000e+00 : f32
    %164 = vector.broadcast %cst_55 : f32 to vector<8x128xf32>
    %165 = arith.maximumf %163, %164 : vector<8x128xf32>
    %166 = vector.broadcast %148 : f32 to vector<8x128xf32>
    %167 = arith.minimumf %10, %166 : vector<8x128xf32>
    %168 = vector.broadcast %146 : f32 to vector<8x128xf32>
    %169 = arith.maximumf %6, %168 : vector<8x128xf32>
    %170 = arith.subf %167, %169 : vector<8x128xf32>
    %cst_56 = arith.constant 1.000000e+00 : f32
    %171 = vector.broadcast %cst_56 : f32 to vector<8x128xf32>
    %172 = arith.addf %170, %171 : vector<8x128xf32>
    %cst_57 = arith.constant 0.000000e+00 : f32
    %173 = vector.broadcast %cst_57 : f32 to vector<8x128xf32>
    %174 = arith.maximumf %172, %173 : vector<8x128xf32>
    %175 = arith.mulf %165, %174 : vector<8x128xf32>
    %176 = vector.broadcast %153 : f32 to vector<8x128xf32>
    %177 = arith.addf %30, %176 : vector<8x128xf32>
    %178 = arith.subf %177, %175 : vector<8x128xf32>
    %179 = arith.divf %175, %178 : vector<8x128xf32>
    %cst_58 = arith.constant 0.000000e+00 : f32
    %180 = vector.broadcast %cst_58 : f32 to vector<8x128xf32>
    %181 = arith.select %156, %180, %179 : vector<8x128xf32>
    %cst_59 = arith.constant -1.000000e+00 : f32
    %182 = vector.broadcast %cst_59 : f32 to vector<8x128xf32>
    %183 = arith.select %35, %182, %181 : vector<8x128xi1>, vector<8x128xf32>
    %cst_60 = arith.constant -1.000000e+30 : f32
    %184 = vector.broadcast %cst_60 : f32 to vector<8x128xf32>
    %185 = arith.select %23, %183, %184 : vector<8x128xi1>, vector<8x128xf32>
    %cst_61 = arith.constant dense<0xFF800000> : vector<8xf32>
    %186 = vector.multi_reduction <maximumf>, %185, %cst_61 [1] : vector<8x128xf32> to vector<8xf32>
    %187 = vector.shape_cast %186 : vector<8xf32> to vector<8x1xf32>
    %cst_62 = arith.constant dense<0xFF800000> : vector<1xf32>
    %188 = vector.multi_reduction <maximumf>, %187, %cst_62 [0] : vector<8x1xf32> to vector<1xf32>
    %189 = vector.shape_cast %188 : vector<1xf32> to vector<1x1xf32>
    %c0_i32_63 = arith.constant 0 : i32
    %190 = vector.broadcast %c0_i32_63 : i32 to vector<2x8xi32>
    %191 = arith.cmpi eq, %36, %190 : vector<2x8xi32>
    %c2_i32 = arith.constant 2 : i32
    %192 = vector.broadcast %c2_i32 : i32 to vector<2x8xi32>
    %193 = arith.cmpi eq, %37, %192 : vector<2x8xi32>
    %194 = arith.andi %191, %193 : vector<2x8xi1>
    %195 = vector.shape_cast %189 : vector<1x1xf32> to vector<1x1xf32>
    %196 = vector.broadcast %195 : vector<1x1xf32> to vector<2x8xf32>
    %197 = arith.select %194, %196, %144 : vector<2x8xi1>, vector<2x8xf32>
    %c15 = arith.constant 15 : index
    %198 = memref.load %arg2[%c15] : memref<80xf32, #tpu.memory_space<smem>>
    %c16 = arith.constant 16 : index
    %199 = memref.load %arg2[%c16] : memref<80xf32, #tpu.memory_space<smem>>
    %c17 = arith.constant 17 : index
    %200 = memref.load %arg2[%c17] : memref<80xf32, #tpu.memory_space<smem>>
    %c18 = arith.constant 18 : index
    %201 = memref.load %arg2[%c18] : memref<80xf32, #tpu.memory_space<smem>>
    %202 = arith.subf %200, %198 : f32
    %cst_64 = arith.constant 1.000000e+00 : f32
    %203 = arith.addf %202, %cst_64 : f32
    %204 = arith.subf %201, %199 : f32
    %cst_65 = arith.constant 1.000000e+00 : f32
    %205 = arith.addf %204, %cst_65 : f32
    %206 = arith.mulf %203, %205 : f32
    %cst_66 = arith.constant 1.000000e+00 : f32
    %207 = arith.cmpf oeq, %203, %cst_66 : f32
    %cst_67 = arith.constant 1.000000e+00 : f32
    %208 = arith.cmpf oeq, %205, %cst_67 : f32
    %209 = arith.andi %207, %208 : i1
    %210 = vector.broadcast %200 : f32 to vector<8x128xf32>
    %211 = arith.minimumf %8, %210 : vector<8x128xf32>
    %212 = vector.broadcast %198 : f32 to vector<8x128xf32>
    %213 = arith.maximumf %4, %212 : vector<8x128xf32>
    %214 = arith.subf %211, %213 : vector<8x128xf32>
    %cst_68 = arith.constant 1.000000e+00 : f32
    %215 = vector.broadcast %cst_68 : f32 to vector<8x128xf32>
    %216 = arith.addf %214, %215 : vector<8x128xf32>
    %cst_69 = arith.constant 0.000000e+00 : f32
    %217 = vector.broadcast %cst_69 : f32 to vector<8x128xf32>
    %218 = arith.maximumf %216, %217 : vector<8x128xf32>
    %219 = vector.broadcast %201 : f32 to vector<8x128xf32>
    %220 = arith.minimumf %10, %219 : vector<8x128xf32>
    %221 = vector.broadcast %199 : f32 to vector<8x128xf32>
    %222 = arith.maximumf %6, %221 : vector<8x128xf32>
    %223 = arith.subf %220, %222 : vector<8x128xf32>
    %cst_70 = arith.constant 1.000000e+00 : f32
    %224 = vector.broadcast %cst_70 : f32 to vector<8x128xf32>
    %225 = arith.addf %223, %224 : vector<8x128xf32>
    %cst_71 = arith.constant 0.000000e+00 : f32
    %226 = vector.broadcast %cst_71 : f32 to vector<8x128xf32>
    %227 = arith.maximumf %225, %226 : vector<8x128xf32>
    %228 = arith.mulf %218, %227 : vector<8x128xf32>
    %229 = vector.broadcast %206 : f32 to vector<8x128xf32>
    %230 = arith.addf %30, %229 : vector<8x128xf32>
    %231 = arith.subf %230, %228 : vector<8x128xf32>
    %232 = arith.divf %228, %231 : vector<8x128xf32>
    %cst_72 = arith.constant 0.000000e+00 : f32
    %233 = vector.broadcast %cst_72 : f32 to vector<8x128xf32>
    %234 = arith.select %209, %233, %232 : vector<8x128xf32>
    %cst_73 = arith.constant -1.000000e+00 : f32
    %235 = vector.broadcast %cst_73 : f32 to vector<8x128xf32>
    %236 = arith.select %35, %235, %234 : vector<8x128xi1>, vector<8x128xf32>
    %cst_74 = arith.constant -1.000000e+30 : f32
    %237 = vector.broadcast %cst_74 : f32 to vector<8x128xf32>
    %238 = arith.select %23, %236, %237 : vector<8x128xi1>, vector<8x128xf32>
    %cst_75 = arith.constant dense<0xFF800000> : vector<8xf32>
    %239 = vector.multi_reduction <maximumf>, %238, %cst_75 [1] : vector<8x128xf32> to vector<8xf32>
    %240 = vector.shape_cast %239 : vector<8xf32> to vector<8x1xf32>
    %cst_76 = arith.constant dense<0xFF800000> : vector<1xf32>
    %241 = vector.multi_reduction <maximumf>, %240, %cst_76 [0] : vector<8x1xf32> to vector<1xf32>
    %242 = vector.shape_cast %241 : vector<1xf32> to vector<1x1xf32>
    %c0_i32_77 = arith.constant 0 : i32
    %243 = vector.broadcast %c0_i32_77 : i32 to vector<2x8xi32>
    %244 = arith.cmpi eq, %36, %243 : vector<2x8xi32>
    %c3_i32 = arith.constant 3 : i32
    %245 = vector.broadcast %c3_i32 : i32 to vector<2x8xi32>
    %246 = arith.cmpi eq, %37, %245 : vector<2x8xi32>
    %247 = arith.andi %244, %246 : vector<2x8xi1>
    %248 = vector.shape_cast %242 : vector<1x1xf32> to vector<1x1xf32>
    %249 = vector.broadcast %248 : vector<1x1xf32> to vector<2x8xf32>
    %250 = arith.select %247, %249, %197 : vector<2x8xi1>, vector<2x8xf32>
    %c20 = arith.constant 20 : index
    %251 = memref.load %arg2[%c20] : memref<80xf32, #tpu.memory_space<smem>>
    %c21 = arith.constant 21 : index
    %252 = memref.load %arg2[%c21] : memref<80xf32, #tpu.memory_space<smem>>
    %c22 = arith.constant 22 : index
    %253 = memref.load %arg2[%c22] : memref<80xf32, #tpu.memory_space<smem>>
    %c23 = arith.constant 23 : index
    %254 = memref.load %arg2[%c23] : memref<80xf32, #tpu.memory_space<smem>>
    %255 = arith.subf %253, %251 : f32
    %cst_78 = arith.constant 1.000000e+00 : f32
    %256 = arith.addf %255, %cst_78 : f32
    %257 = arith.subf %254, %252 : f32
    %cst_79 = arith.constant 1.000000e+00 : f32
    %258 = arith.addf %257, %cst_79 : f32
    %259 = arith.mulf %256, %258 : f32
    %cst_80 = arith.constant 1.000000e+00 : f32
    %260 = arith.cmpf oeq, %256, %cst_80 : f32
    %cst_81 = arith.constant 1.000000e+00 : f32
    %261 = arith.cmpf oeq, %258, %cst_81 : f32
    %262 = arith.andi %260, %261 : i1
    %263 = vector.broadcast %253 : f32 to vector<8x128xf32>
    %264 = arith.minimumf %8, %263 : vector<8x128xf32>
    %265 = vector.broadcast %251 : f32 to vector<8x128xf32>
    %266 = arith.maximumf %4, %265 : vector<8x128xf32>
    %267 = arith.subf %264, %266 : vector<8x128xf32>
    %cst_82 = arith.constant 1.000000e+00 : f32
    %268 = vector.broadcast %cst_82 : f32 to vector<8x128xf32>
    %269 = arith.addf %267, %268 : vector<8x128xf32>
    %cst_83 = arith.constant 0.000000e+00 : f32
    %270 = vector.broadcast %cst_83 : f32 to vector<8x128xf32>
    %271 = arith.maximumf %269, %270 : vector<8x128xf32>
    %272 = vector.broadcast %254 : f32 to vector<8x128xf32>
    %273 = arith.minimumf %10, %272 : vector<8x128xf32>
    %274 = vector.broadcast %252 : f32 to vector<8x128xf32>
    %275 = arith.maximumf %6, %274 : vector<8x128xf32>
    %276 = arith.subf %273, %275 : vector<8x128xf32>
    %cst_84 = arith.constant 1.000000e+00 : f32
    %277 = vector.broadcast %cst_84 : f32 to vector<8x128xf32>
    %278 = arith.addf %276, %277 : vector<8x128xf32>
    %cst_85 = arith.constant 0.000000e+00 : f32
    %279 = vector.broadcast %cst_85 : f32 to vector<8x128xf32>
    %280 = arith.maximumf %278, %279 : vector<8x128xf32>
    %281 = arith.mulf %271, %280 : vector<8x128xf32>
    %282 = vector.broadcast %259 : f32 to vector<8x128xf32>
    %283 = arith.addf %30, %282 : vector<8x128xf32>
    %284 = arith.subf %283, %281 : vector<8x128xf32>
    %285 = arith.divf %281, %284 : vector<8x128xf32>
    %cst_86 = arith.constant 0.000000e+00 : f32
    %286 = vector.broadcast %cst_86 : f32 to vector<8x128xf32>
    %287 = arith.select %262, %286, %285 : vector<8x128xf32>
    %cst_87 = arith.constant -1.000000e+00 : f32
    %288 = vector.broadcast %cst_87 : f32 to vector<8x128xf32>
    %289 = arith.select %35, %288, %287 : vector<8x128xi1>, vector<8x128xf32>
    %cst_88 = arith.constant -1.000000e+30 : f32
    %290 = vector.broadcast %cst_88 : f32 to vector<8x128xf32>
    %291 = arith.select %23, %289, %290 : vector<8x128xi1>, vector<8x128xf32>
    %cst_89 = arith.constant dense<0xFF800000> : vector<8xf32>
    %292 = vector.multi_reduction <maximumf>, %291, %cst_89 [1] : vector<8x128xf32> to vector<8xf32>
    %293 = vector.shape_cast %292 : vector<8xf32> to vector<8x1xf32>
    %cst_90 = arith.constant dense<0xFF800000> : vector<1xf32>
    %294 = vector.multi_reduction <maximumf>, %293, %cst_90 [0] : vector<8x1xf32> to vector<1xf32>
    %295 = vector.shape_cast %294 : vector<1xf32> to vector<1x1xf32>
    %c0_i32_91 = arith.constant 0 : i32
    %296 = vector.broadcast %c0_i32_91 : i32 to vector<2x8xi32>
    %297 = arith.cmpi eq, %36, %296 : vector<2x8xi32>
    %c4_i32 = arith.constant 4 : i32
    %298 = vector.broadcast %c4_i32 : i32 to vector<2x8xi32>
    %299 = arith.cmpi eq, %37, %298 : vector<2x8xi32>
    %300 = arith.andi %297, %299 : vector<2x8xi1>
    %301 = vector.shape_cast %295 : vector<1x1xf32> to vector<1x1xf32>
    %302 = vector.broadcast %301 : vector<1x1xf32> to vector<2x8xf32>
    %303 = arith.select %300, %302, %250 : vector<2x8xi1>, vector<2x8xf32>
    %c25 = arith.constant 25 : index
    %304 = memref.load %arg2[%c25] : memref<80xf32, #tpu.memory_space<smem>>
    %c26 = arith.constant 26 : index
    %305 = memref.load %arg2[%c26] : memref<80xf32, #tpu.memory_space<smem>>
    %c27 = arith.constant 27 : index
    %306 = memref.load %arg2[%c27] : memref<80xf32, #tpu.memory_space<smem>>
    %c28 = arith.constant 28 : index
    %307 = memref.load %arg2[%c28] : memref<80xf32, #tpu.memory_space<smem>>
    %308 = arith.subf %306, %304 : f32
    %cst_92 = arith.constant 1.000000e+00 : f32
    %309 = arith.addf %308, %cst_92 : f32
    %310 = arith.subf %307, %305 : f32
    %cst_93 = arith.constant 1.000000e+00 : f32
    %311 = arith.addf %310, %cst_93 : f32
    %312 = arith.mulf %309, %311 : f32
    %cst_94 = arith.constant 1.000000e+00 : f32
    %313 = arith.cmpf oeq, %309, %cst_94 : f32
    %cst_95 = arith.constant 1.000000e+00 : f32
    %314 = arith.cmpf oeq, %311, %cst_95 : f32
    %315 = arith.andi %313, %314 : i1
    %316 = vector.broadcast %306 : f32 to vector<8x128xf32>
    %317 = arith.minimumf %8, %316 : vector<8x128xf32>
    %318 = vector.broadcast %304 : f32 to vector<8x128xf32>
    %319 = arith.maximumf %4, %318 : vector<8x128xf32>
    %320 = arith.subf %317, %319 : vector<8x128xf32>
    %cst_96 = arith.constant 1.000000e+00 : f32
    %321 = vector.broadcast %cst_96 : f32 to vector<8x128xf32>
    %322 = arith.addf %320, %321 : vector<8x128xf32>
    %cst_97 = arith.constant 0.000000e+00 : f32
    %323 = vector.broadcast %cst_97 : f32 to vector<8x128xf32>
    %324 = arith.maximumf %322, %323 : vector<8x128xf32>
    %325 = vector.broadcast %307 : f32 to vector<8x128xf32>
    %326 = arith.minimumf %10, %325 : vector<8x128xf32>
    %327 = vector.broadcast %305 : f32 to vector<8x128xf32>
    %328 = arith.maximumf %6, %327 : vector<8x128xf32>
    %329 = arith.subf %326, %328 : vector<8x128xf32>
    %cst_98 = arith.constant 1.000000e+00 : f32
    %330 = vector.broadcast %cst_98 : f32 to vector<8x128xf32>
    %331 = arith.addf %329, %330 : vector<8x128xf32>
    %cst_99 = arith.constant 0.000000e+00 : f32
    %332 = vector.broadcast %cst_99 : f32 to vector<8x128xf32>
    %333 = arith.maximumf %331, %332 : vector<8x128xf32>
    %334 = arith.mulf %324, %333 : vector<8x128xf32>
    %335 = vector.broadcast %312 : f32 to vector<8x128xf32>
    %336 = arith.addf %30, %335 : vector<8x128xf32>
    %337 = arith.subf %336, %334 : vector<8x128xf32>
    %338 = arith.divf %334, %337 : vector<8x128xf32>
    %cst_100 = arith.constant 0.000000e+00 : f32
    %339 = vector.broadcast %cst_100 : f32 to vector<8x128xf32>
    %340 = arith.select %315, %339, %338 : vector<8x128xf32>
    %cst_101 = arith.constant -1.000000e+00 : f32
    %341 = vector.broadcast %cst_101 : f32 to vector<8x128xf32>
    %342 = arith.select %35, %341, %340 : vector<8x128xi1>, vector<8x128xf32>
    %cst_102 = arith.constant -1.000000e+30 : f32
    %343 = vector.broadcast %cst_102 : f32 to vector<8x128xf32>
    %344 = arith.select %23, %342, %343 : vector<8x128xi1>, vector<8x128xf32>
    %cst_103 = arith.constant dense<0xFF800000> : vector<8xf32>
    %345 = vector.multi_reduction <maximumf>, %344, %cst_103 [1] : vector<8x128xf32> to vector<8xf32>
    %346 = vector.shape_cast %345 : vector<8xf32> to vector<8x1xf32>
    %cst_104 = arith.constant dense<0xFF800000> : vector<1xf32>
    %347 = vector.multi_reduction <maximumf>, %346, %cst_104 [0] : vector<8x1xf32> to vector<1xf32>
    %348 = vector.shape_cast %347 : vector<1xf32> to vector<1x1xf32>
    %c0_i32_105 = arith.constant 0 : i32
    %349 = vector.broadcast %c0_i32_105 : i32 to vector<2x8xi32>
    %350 = arith.cmpi eq, %36, %349 : vector<2x8xi32>
    %c5_i32 = arith.constant 5 : i32
    %351 = vector.broadcast %c5_i32 : i32 to vector<2x8xi32>
    %352 = arith.cmpi eq, %37, %351 : vector<2x8xi32>
    %353 = arith.andi %350, %352 : vector<2x8xi1>
    %354 = vector.shape_cast %348 : vector<1x1xf32> to vector<1x1xf32>
    %355 = vector.broadcast %354 : vector<1x1xf32> to vector<2x8xf32>
    %356 = arith.select %353, %355, %303 : vector<2x8xi1>, vector<2x8xf32>
    %c30 = arith.constant 30 : index
    %357 = memref.load %arg2[%c30] : memref<80xf32, #tpu.memory_space<smem>>
    %c31 = arith.constant 31 : index
    %358 = memref.load %arg2[%c31] : memref<80xf32, #tpu.memory_space<smem>>
    %c32 = arith.constant 32 : index
    %359 = memref.load %arg2[%c32] : memref<80xf32, #tpu.memory_space<smem>>
    %c33 = arith.constant 33 : index
    %360 = memref.load %arg2[%c33] : memref<80xf32, #tpu.memory_space<smem>>
    %361 = arith.subf %359, %357 : f32
    %cst_106 = arith.constant 1.000000e+00 : f32
    %362 = arith.addf %361, %cst_106 : f32
    %363 = arith.subf %360, %358 : f32
    %cst_107 = arith.constant 1.000000e+00 : f32
    %364 = arith.addf %363, %cst_107 : f32
    %365 = arith.mulf %362, %364 : f32
    %cst_108 = arith.constant 1.000000e+00 : f32
    %366 = arith.cmpf oeq, %362, %cst_108 : f32
    %cst_109 = arith.constant 1.000000e+00 : f32
    %367 = arith.cmpf oeq, %364, %cst_109 : f32
    %368 = arith.andi %366, %367 : i1
    %369 = vector.broadcast %359 : f32 to vector<8x128xf32>
    %370 = arith.minimumf %8, %369 : vector<8x128xf32>
    %371 = vector.broadcast %357 : f32 to vector<8x128xf32>
    %372 = arith.maximumf %4, %371 : vector<8x128xf32>
    %373 = arith.subf %370, %372 : vector<8x128xf32>
    %cst_110 = arith.constant 1.000000e+00 : f32
    %374 = vector.broadcast %cst_110 : f32 to vector<8x128xf32>
    %375 = arith.addf %373, %374 : vector<8x128xf32>
    %cst_111 = arith.constant 0.000000e+00 : f32
    %376 = vector.broadcast %cst_111 : f32 to vector<8x128xf32>
    %377 = arith.maximumf %375, %376 : vector<8x128xf32>
    %378 = vector.broadcast %360 : f32 to vector<8x128xf32>
    %379 = arith.minimumf %10, %378 : vector<8x128xf32>
    %380 = vector.broadcast %358 : f32 to vector<8x128xf32>
    %381 = arith.maximumf %6, %380 : vector<8x128xf32>
    %382 = arith.subf %379, %381 : vector<8x128xf32>
    %cst_112 = arith.constant 1.000000e+00 : f32
    %383 = vector.broadcast %cst_112 : f32 to vector<8x128xf32>
    %384 = arith.addf %382, %383 : vector<8x128xf32>
    %cst_113 = arith.constant 0.000000e+00 : f32
    %385 = vector.broadcast %cst_113 : f32 to vector<8x128xf32>
    %386 = arith.maximumf %384, %385 : vector<8x128xf32>
    %387 = arith.mulf %377, %386 : vector<8x128xf32>
    %388 = vector.broadcast %365 : f32 to vector<8x128xf32>
    %389 = arith.addf %30, %388 : vector<8x128xf32>
    %390 = arith.subf %389, %387 : vector<8x128xf32>
    %391 = arith.divf %387, %390 : vector<8x128xf32>
    %cst_114 = arith.constant 0.000000e+00 : f32
    %392 = vector.broadcast %cst_114 : f32 to vector<8x128xf32>
    %393 = arith.select %368, %392, %391 : vector<8x128xf32>
    %cst_115 = arith.constant -1.000000e+00 : f32
    %394 = vector.broadcast %cst_115 : f32 to vector<8x128xf32>
    %395 = arith.select %35, %394, %393 : vector<8x128xi1>, vector<8x128xf32>
    %cst_116 = arith.constant -1.000000e+30 : f32
    %396 = vector.broadcast %cst_116 : f32 to vector<8x128xf32>
    %397 = arith.select %23, %395, %396 : vector<8x128xi1>, vector<8x128xf32>
    %cst_117 = arith.constant dense<0xFF800000> : vector<8xf32>
    %398 = vector.multi_reduction <maximumf>, %397, %cst_117 [1] : vector<8x128xf32> to vector<8xf32>
    %399 = vector.shape_cast %398 : vector<8xf32> to vector<8x1xf32>
    %cst_118 = arith.constant dense<0xFF800000> : vector<1xf32>
    %400 = vector.multi_reduction <maximumf>, %399, %cst_118 [0] : vector<8x1xf32> to vector<1xf32>
    %401 = vector.shape_cast %400 : vector<1xf32> to vector<1x1xf32>
    %c0_i32_119 = arith.constant 0 : i32
    %402 = vector.broadcast %c0_i32_119 : i32 to vector<2x8xi32>
    %403 = arith.cmpi eq, %36, %402 : vector<2x8xi32>
    %c6_i32 = arith.constant 6 : i32
    %404 = vector.broadcast %c6_i32 : i32 to vector<2x8xi32>
    %405 = arith.cmpi eq, %37, %404 : vector<2x8xi32>
    %406 = arith.andi %403, %405 : vector<2x8xi1>
    %407 = vector.shape_cast %401 : vector<1x1xf32> to vector<1x1xf32>
    %408 = vector.broadcast %407 : vector<1x1xf32> to vector<2x8xf32>
    %409 = arith.select %406, %408, %356 : vector<2x8xi1>, vector<2x8xf32>
    %c35 = arith.constant 35 : index
    %410 = memref.load %arg2[%c35] : memref<80xf32, #tpu.memory_space<smem>>
    %c36 = arith.constant 36 : index
    %411 = memref.load %arg2[%c36] : memref<80xf32, #tpu.memory_space<smem>>
    %c37 = arith.constant 37 : index
    %412 = memref.load %arg2[%c37] : memref<80xf32, #tpu.memory_space<smem>>
    %c38 = arith.constant 38 : index
    %413 = memref.load %arg2[%c38] : memref<80xf32, #tpu.memory_space<smem>>
    %414 = arith.subf %412, %410 : f32
    %cst_120 = arith.constant 1.000000e+00 : f32
    %415 = arith.addf %414, %cst_120 : f32
    %416 = arith.subf %413, %411 : f32
    %cst_121 = arith.constant 1.000000e+00 : f32
    %417 = arith.addf %416, %cst_121 : f32
    %418 = arith.mulf %415, %417 : f32
    %cst_122 = arith.constant 1.000000e+00 : f32
    %419 = arith.cmpf oeq, %415, %cst_122 : f32
    %cst_123 = arith.constant 1.000000e+00 : f32
    %420 = arith.cmpf oeq, %417, %cst_123 : f32
    %421 = arith.andi %419, %420 : i1
    %422 = vector.broadcast %412 : f32 to vector<8x128xf32>
    %423 = arith.minimumf %8, %422 : vector<8x128xf32>
    %424 = vector.broadcast %410 : f32 to vector<8x128xf32>
    %425 = arith.maximumf %4, %424 : vector<8x128xf32>
    %426 = arith.subf %423, %425 : vector<8x128xf32>
    %cst_124 = arith.constant 1.000000e+00 : f32
    %427 = vector.broadcast %cst_124 : f32 to vector<8x128xf32>
    %428 = arith.addf %426, %427 : vector<8x128xf32>
    %cst_125 = arith.constant 0.000000e+00 : f32
    %429 = vector.broadcast %cst_125 : f32 to vector<8x128xf32>
    %430 = arith.maximumf %428, %429 : vector<8x128xf32>
    %431 = vector.broadcast %413 : f32 to vector<8x128xf32>
    %432 = arith.minimumf %10, %431 : vector<8x128xf32>
    %433 = vector.broadcast %411 : f32 to vector<8x128xf32>
    %434 = arith.maximumf %6, %433 : vector<8x128xf32>
    %435 = arith.subf %432, %434 : vector<8x128xf32>
    %cst_126 = arith.constant 1.000000e+00 : f32
    %436 = vector.broadcast %cst_126 : f32 to vector<8x128xf32>
    %437 = arith.addf %435, %436 : vector<8x128xf32>
    %cst_127 = arith.constant 0.000000e+00 : f32
    %438 = vector.broadcast %cst_127 : f32 to vector<8x128xf32>
    %439 = arith.maximumf %437, %438 : vector<8x128xf32>
    %440 = arith.mulf %430, %439 : vector<8x128xf32>
    %441 = vector.broadcast %418 : f32 to vector<8x128xf32>
    %442 = arith.addf %30, %441 : vector<8x128xf32>
    %443 = arith.subf %442, %440 : vector<8x128xf32>
    %444 = arith.divf %440, %443 : vector<8x128xf32>
    %cst_128 = arith.constant 0.000000e+00 : f32
    %445 = vector.broadcast %cst_128 : f32 to vector<8x128xf32>
    %446 = arith.select %421, %445, %444 : vector<8x128xf32>
    %cst_129 = arith.constant -1.000000e+00 : f32
    %447 = vector.broadcast %cst_129 : f32 to vector<8x128xf32>
    %448 = arith.select %35, %447, %446 : vector<8x128xi1>, vector<8x128xf32>
    %cst_130 = arith.constant -1.000000e+30 : f32
    %449 = vector.broadcast %cst_130 : f32 to vector<8x128xf32>
    %450 = arith.select %23, %448, %449 : vector<8x128xi1>, vector<8x128xf32>
    %cst_131 = arith.constant dense<0xFF800000> : vector<8xf32>
    %451 = vector.multi_reduction <maximumf>, %450, %cst_131 [1] : vector<8x128xf32> to vector<8xf32>
    %452 = vector.shape_cast %451 : vector<8xf32> to vector<8x1xf32>
    %cst_132 = arith.constant dense<0xFF800000> : vector<1xf32>
    %453 = vector.multi_reduction <maximumf>, %452, %cst_132 [0] : vector<8x1xf32> to vector<1xf32>
    %454 = vector.shape_cast %453 : vector<1xf32> to vector<1x1xf32>
    %c0_i32_133 = arith.constant 0 : i32
    %455 = vector.broadcast %c0_i32_133 : i32 to vector<2x8xi32>
    %456 = arith.cmpi eq, %36, %455 : vector<2x8xi32>
    %c7_i32 = arith.constant 7 : i32
    %457 = vector.broadcast %c7_i32 : i32 to vector<2x8xi32>
    %458 = arith.cmpi eq, %37, %457 : vector<2x8xi32>
    %459 = arith.andi %456, %458 : vector<2x8xi1>
    %460 = vector.shape_cast %454 : vector<1x1xf32> to vector<1x1xf32>
    %461 = vector.broadcast %460 : vector<1x1xf32> to vector<2x8xf32>
    %462 = arith.select %459, %461, %409 : vector<2x8xi1>, vector<2x8xf32>
    %c40 = arith.constant 40 : index
    %463 = memref.load %arg2[%c40] : memref<80xf32, #tpu.memory_space<smem>>
    %c41 = arith.constant 41 : index
    %464 = memref.load %arg2[%c41] : memref<80xf32, #tpu.memory_space<smem>>
    %c42 = arith.constant 42 : index
    %465 = memref.load %arg2[%c42] : memref<80xf32, #tpu.memory_space<smem>>
    %c43 = arith.constant 43 : index
    %466 = memref.load %arg2[%c43] : memref<80xf32, #tpu.memory_space<smem>>
    %467 = arith.subf %465, %463 : f32
    %cst_134 = arith.constant 1.000000e+00 : f32
    %468 = arith.addf %467, %cst_134 : f32
    %469 = arith.subf %466, %464 : f32
    %cst_135 = arith.constant 1.000000e+00 : f32
    %470 = arith.addf %469, %cst_135 : f32
    %471 = arith.mulf %468, %470 : f32
    %cst_136 = arith.constant 1.000000e+00 : f32
    %472 = arith.cmpf oeq, %468, %cst_136 : f32
    %cst_137 = arith.constant 1.000000e+00 : f32
    %473 = arith.cmpf oeq, %470, %cst_137 : f32
    %474 = arith.andi %472, %473 : i1
    %475 = vector.broadcast %465 : f32 to vector<8x128xf32>
    %476 = arith.minimumf %8, %475 : vector<8x128xf32>
    %477 = vector.broadcast %463 : f32 to vector<8x128xf32>
    %478 = arith.maximumf %4, %477 : vector<8x128xf32>
    %479 = arith.subf %476, %478 : vector<8x128xf32>
    %cst_138 = arith.constant 1.000000e+00 : f32
    %480 = vector.broadcast %cst_138 : f32 to vector<8x128xf32>
    %481 = arith.addf %479, %480 : vector<8x128xf32>
    %cst_139 = arith.constant 0.000000e+00 : f32
    %482 = vector.broadcast %cst_139 : f32 to vector<8x128xf32>
    %483 = arith.maximumf %481, %482 : vector<8x128xf32>
    %484 = vector.broadcast %466 : f32 to vector<8x128xf32>
    %485 = arith.minimumf %10, %484 : vector<8x128xf32>
    %486 = vector.broadcast %464 : f32 to vector<8x128xf32>
    %487 = arith.maximumf %6, %486 : vector<8x128xf32>
    %488 = arith.subf %485, %487 : vector<8x128xf32>
    %cst_140 = arith.constant 1.000000e+00 : f32
    %489 = vector.broadcast %cst_140 : f32 to vector<8x128xf32>
    %490 = arith.addf %488, %489 : vector<8x128xf32>
    %cst_141 = arith.constant 0.000000e+00 : f32
    %491 = vector.broadcast %cst_141 : f32 to vector<8x128xf32>
    %492 = arith.maximumf %490, %491 : vector<8x128xf32>
    %493 = arith.mulf %483, %492 : vector<8x128xf32>
    %494 = vector.broadcast %471 : f32 to vector<8x128xf32>
    %495 = arith.addf %30, %494 : vector<8x128xf32>
    %496 = arith.subf %495, %493 : vector<8x128xf32>
    %497 = arith.divf %493, %496 : vector<8x128xf32>
    %cst_142 = arith.constant 0.000000e+00 : f32
    %498 = vector.broadcast %cst_142 : f32 to vector<8x128xf32>
    %499 = arith.select %474, %498, %497 : vector<8x128xf32>
    %cst_143 = arith.constant -1.000000e+00 : f32
    %500 = vector.broadcast %cst_143 : f32 to vector<8x128xf32>
    %501 = arith.select %35, %500, %499 : vector<8x128xi1>, vector<8x128xf32>
    %cst_144 = arith.constant -1.000000e+30 : f32
    %502 = vector.broadcast %cst_144 : f32 to vector<8x128xf32>
    %503 = arith.select %23, %501, %502 : vector<8x128xi1>, vector<8x128xf32>
    %cst_145 = arith.constant dense<0xFF800000> : vector<8xf32>
    %504 = vector.multi_reduction <maximumf>, %503, %cst_145 [1] : vector<8x128xf32> to vector<8xf32>
    %505 = vector.shape_cast %504 : vector<8xf32> to vector<8x1xf32>
    %cst_146 = arith.constant dense<0xFF800000> : vector<1xf32>
    %506 = vector.multi_reduction <maximumf>, %505, %cst_146 [0] : vector<8x1xf32> to vector<1xf32>
    %507 = vector.shape_cast %506 : vector<1xf32> to vector<1x1xf32>
    %c1_i32_147 = arith.constant 1 : i32
    %508 = vector.broadcast %c1_i32_147 : i32 to vector<2x8xi32>
    %509 = arith.cmpi eq, %36, %508 : vector<2x8xi32>
    %c0_i32_148 = arith.constant 0 : i32
    %510 = vector.broadcast %c0_i32_148 : i32 to vector<2x8xi32>
    %511 = arith.cmpi eq, %37, %510 : vector<2x8xi32>
    %512 = arith.andi %509, %511 : vector<2x8xi1>
    %513 = vector.shape_cast %507 : vector<1x1xf32> to vector<1x1xf32>
    %514 = vector.broadcast %513 : vector<1x1xf32> to vector<2x8xf32>
    %515 = arith.select %512, %514, %462 : vector<2x8xi1>, vector<2x8xf32>
    %c45 = arith.constant 45 : index
    %516 = memref.load %arg2[%c45] : memref<80xf32, #tpu.memory_space<smem>>
    %c46 = arith.constant 46 : index
    %517 = memref.load %arg2[%c46] : memref<80xf32, #tpu.memory_space<smem>>
    %c47 = arith.constant 47 : index
    %518 = memref.load %arg2[%c47] : memref<80xf32, #tpu.memory_space<smem>>
    %c48 = arith.constant 48 : index
    %519 = memref.load %arg2[%c48] : memref<80xf32, #tpu.memory_space<smem>>
    %520 = arith.subf %518, %516 : f32
    %cst_149 = arith.constant 1.000000e+00 : f32
    %521 = arith.addf %520, %cst_149 : f32
    %522 = arith.subf %519, %517 : f32
    %cst_150 = arith.constant 1.000000e+00 : f32
    %523 = arith.addf %522, %cst_150 : f32
    %524 = arith.mulf %521, %523 : f32
    %cst_151 = arith.constant 1.000000e+00 : f32
    %525 = arith.cmpf oeq, %521, %cst_151 : f32
    %cst_152 = arith.constant 1.000000e+00 : f32
    %526 = arith.cmpf oeq, %523, %cst_152 : f32
    %527 = arith.andi %525, %526 : i1
    %528 = vector.broadcast %518 : f32 to vector<8x128xf32>
    %529 = arith.minimumf %8, %528 : vector<8x128xf32>
    %530 = vector.broadcast %516 : f32 to vector<8x128xf32>
    %531 = arith.maximumf %4, %530 : vector<8x128xf32>
    %532 = arith.subf %529, %531 : vector<8x128xf32>
    %cst_153 = arith.constant 1.000000e+00 : f32
    %533 = vector.broadcast %cst_153 : f32 to vector<8x128xf32>
    %534 = arith.addf %532, %533 : vector<8x128xf32>
    %cst_154 = arith.constant 0.000000e+00 : f32
    %535 = vector.broadcast %cst_154 : f32 to vector<8x128xf32>
    %536 = arith.maximumf %534, %535 : vector<8x128xf32>
    %537 = vector.broadcast %519 : f32 to vector<8x128xf32>
    %538 = arith.minimumf %10, %537 : vector<8x128xf32>
    %539 = vector.broadcast %517 : f32 to vector<8x128xf32>
    %540 = arith.maximumf %6, %539 : vector<8x128xf32>
    %541 = arith.subf %538, %540 : vector<8x128xf32>
    %cst_155 = arith.constant 1.000000e+00 : f32
    %542 = vector.broadcast %cst_155 : f32 to vector<8x128xf32>
    %543 = arith.addf %541, %542 : vector<8x128xf32>
    %cst_156 = arith.constant 0.000000e+00 : f32
    %544 = vector.broadcast %cst_156 : f32 to vector<8x128xf32>
    %545 = arith.maximumf %543, %544 : vector<8x128xf32>
    %546 = arith.mulf %536, %545 : vector<8x128xf32>
    %547 = vector.broadcast %524 : f32 to vector<8x128xf32>
    %548 = arith.addf %30, %547 : vector<8x128xf32>
    %549 = arith.subf %548, %546 : vector<8x128xf32>
    %550 = arith.divf %546, %549 : vector<8x128xf32>
    %cst_157 = arith.constant 0.000000e+00 : f32
    %551 = vector.broadcast %cst_157 : f32 to vector<8x128xf32>
    %552 = arith.select %527, %551, %550 : vector<8x128xf32>
    %cst_158 = arith.constant -1.000000e+00 : f32
    %553 = vector.broadcast %cst_158 : f32 to vector<8x128xf32>
    %554 = arith.select %35, %553, %552 : vector<8x128xi1>, vector<8x128xf32>
    %cst_159 = arith.constant -1.000000e+30 : f32
    %555 = vector.broadcast %cst_159 : f32 to vector<8x128xf32>
    %556 = arith.select %23, %554, %555 : vector<8x128xi1>, vector<8x128xf32>
    %cst_160 = arith.constant dense<0xFF800000> : vector<8xf32>
    %557 = vector.multi_reduction <maximumf>, %556, %cst_160 [1] : vector<8x128xf32> to vector<8xf32>
    %558 = vector.shape_cast %557 : vector<8xf32> to vector<8x1xf32>
    %cst_161 = arith.constant dense<0xFF800000> : vector<1xf32>
    %559 = vector.multi_reduction <maximumf>, %558, %cst_161 [0] : vector<8x1xf32> to vector<1xf32>
    %560 = vector.shape_cast %559 : vector<1xf32> to vector<1x1xf32>
    %c1_i32_162 = arith.constant 1 : i32
    %561 = vector.broadcast %c1_i32_162 : i32 to vector<2x8xi32>
    %562 = arith.cmpi eq, %36, %561 : vector<2x8xi32>
    %c1_i32_163 = arith.constant 1 : i32
    %563 = vector.broadcast %c1_i32_163 : i32 to vector<2x8xi32>
    %564 = arith.cmpi eq, %37, %563 : vector<2x8xi32>
    %565 = arith.andi %562, %564 : vector<2x8xi1>
    %566 = vector.shape_cast %560 : vector<1x1xf32> to vector<1x1xf32>
    %567 = vector.broadcast %566 : vector<1x1xf32> to vector<2x8xf32>
    %568 = arith.select %565, %567, %515 : vector<2x8xi1>, vector<2x8xf32>
    %c50 = arith.constant 50 : index
    %569 = memref.load %arg2[%c50] : memref<80xf32, #tpu.memory_space<smem>>
    %c51 = arith.constant 51 : index
    %570 = memref.load %arg2[%c51] : memref<80xf32, #tpu.memory_space<smem>>
    %c52 = arith.constant 52 : index
    %571 = memref.load %arg2[%c52] : memref<80xf32, #tpu.memory_space<smem>>
    %c53 = arith.constant 53 : index
    %572 = memref.load %arg2[%c53] : memref<80xf32, #tpu.memory_space<smem>>
    %573 = arith.subf %571, %569 : f32
    %cst_164 = arith.constant 1.000000e+00 : f32
    %574 = arith.addf %573, %cst_164 : f32
    %575 = arith.subf %572, %570 : f32
    %cst_165 = arith.constant 1.000000e+00 : f32
    %576 = arith.addf %575, %cst_165 : f32
    %577 = arith.mulf %574, %576 : f32
    %cst_166 = arith.constant 1.000000e+00 : f32
    %578 = arith.cmpf oeq, %574, %cst_166 : f32
    %cst_167 = arith.constant 1.000000e+00 : f32
    %579 = arith.cmpf oeq, %576, %cst_167 : f32
    %580 = arith.andi %578, %579 : i1
    %581 = vector.broadcast %571 : f32 to vector<8x128xf32>
    %582 = arith.minimumf %8, %581 : vector<8x128xf32>
    %583 = vector.broadcast %569 : f32 to vector<8x128xf32>
    %584 = arith.maximumf %4, %583 : vector<8x128xf32>
    %585 = arith.subf %582, %584 : vector<8x128xf32>
    %cst_168 = arith.constant 1.000000e+00 : f32
    %586 = vector.broadcast %cst_168 : f32 to vector<8x128xf32>
    %587 = arith.addf %585, %586 : vector<8x128xf32>
    %cst_169 = arith.constant 0.000000e+00 : f32
    %588 = vector.broadcast %cst_169 : f32 to vector<8x128xf32>
    %589 = arith.maximumf %587, %588 : vector<8x128xf32>
    %590 = vector.broadcast %572 : f32 to vector<8x128xf32>
    %591 = arith.minimumf %10, %590 : vector<8x128xf32>
    %592 = vector.broadcast %570 : f32 to vector<8x128xf32>
    %593 = arith.maximumf %6, %592 : vector<8x128xf32>
    %594 = arith.subf %591, %593 : vector<8x128xf32>
    %cst_170 = arith.constant 1.000000e+00 : f32
    %595 = vector.broadcast %cst_170 : f32 to vector<8x128xf32>
    %596 = arith.addf %594, %595 : vector<8x128xf32>
    %cst_171 = arith.constant 0.000000e+00 : f32
    %597 = vector.broadcast %cst_171 : f32 to vector<8x128xf32>
    %598 = arith.maximumf %596, %597 : vector<8x128xf32>
    %599 = arith.mulf %589, %598 : vector<8x128xf32>
    %600 = vector.broadcast %577 : f32 to vector<8x128xf32>
    %601 = arith.addf %30, %600 : vector<8x128xf32>
    %602 = arith.subf %601, %599 : vector<8x128xf32>
    %603 = arith.divf %599, %602 : vector<8x128xf32>
    %cst_172 = arith.constant 0.000000e+00 : f32
    %604 = vector.broadcast %cst_172 : f32 to vector<8x128xf32>
    %605 = arith.select %580, %604, %603 : vector<8x128xf32>
    %cst_173 = arith.constant -1.000000e+00 : f32
    %606 = vector.broadcast %cst_173 : f32 to vector<8x128xf32>
    %607 = arith.select %35, %606, %605 : vector<8x128xi1>, vector<8x128xf32>
    %cst_174 = arith.constant -1.000000e+30 : f32
    %608 = vector.broadcast %cst_174 : f32 to vector<8x128xf32>
    %609 = arith.select %23, %607, %608 : vector<8x128xi1>, vector<8x128xf32>
    %cst_175 = arith.constant dense<0xFF800000> : vector<8xf32>
    %610 = vector.multi_reduction <maximumf>, %609, %cst_175 [1] : vector<8x128xf32> to vector<8xf32>
    %611 = vector.shape_cast %610 : vector<8xf32> to vector<8x1xf32>
    %cst_176 = arith.constant dense<0xFF800000> : vector<1xf32>
    %612 = vector.multi_reduction <maximumf>, %611, %cst_176 [0] : vector<8x1xf32> to vector<1xf32>
    %613 = vector.shape_cast %612 : vector<1xf32> to vector<1x1xf32>
    %c1_i32_177 = arith.constant 1 : i32
    %614 = vector.broadcast %c1_i32_177 : i32 to vector<2x8xi32>
    %615 = arith.cmpi eq, %36, %614 : vector<2x8xi32>
    %c2_i32_178 = arith.constant 2 : i32
    %616 = vector.broadcast %c2_i32_178 : i32 to vector<2x8xi32>
    %617 = arith.cmpi eq, %37, %616 : vector<2x8xi32>
    %618 = arith.andi %615, %617 : vector<2x8xi1>
    %619 = vector.shape_cast %613 : vector<1x1xf32> to vector<1x1xf32>
    %620 = vector.broadcast %619 : vector<1x1xf32> to vector<2x8xf32>
    %621 = arith.select %618, %620, %568 : vector<2x8xi1>, vector<2x8xf32>
    %c55 = arith.constant 55 : index
    %622 = memref.load %arg2[%c55] : memref<80xf32, #tpu.memory_space<smem>>
    %c56 = arith.constant 56 : index
    %623 = memref.load %arg2[%c56] : memref<80xf32, #tpu.memory_space<smem>>
    %c57 = arith.constant 57 : index
    %624 = memref.load %arg2[%c57] : memref<80xf32, #tpu.memory_space<smem>>
    %c58 = arith.constant 58 : index
    %625 = memref.load %arg2[%c58] : memref<80xf32, #tpu.memory_space<smem>>
    %626 = arith.subf %624, %622 : f32
    %cst_179 = arith.constant 1.000000e+00 : f32
    %627 = arith.addf %626, %cst_179 : f32
    %628 = arith.subf %625, %623 : f32
    %cst_180 = arith.constant 1.000000e+00 : f32
    %629 = arith.addf %628, %cst_180 : f32
    %630 = arith.mulf %627, %629 : f32
    %cst_181 = arith.constant 1.000000e+00 : f32
    %631 = arith.cmpf oeq, %627, %cst_181 : f32
    %cst_182 = arith.constant 1.000000e+00 : f32
    %632 = arith.cmpf oeq, %629, %cst_182 : f32
    %633 = arith.andi %631, %632 : i1
    %634 = vector.broadcast %624 : f32 to vector<8x128xf32>
    %635 = arith.minimumf %8, %634 : vector<8x128xf32>
    %636 = vector.broadcast %622 : f32 to vector<8x128xf32>
    %637 = arith.maximumf %4, %636 : vector<8x128xf32>
    %638 = arith.subf %635, %637 : vector<8x128xf32>
    %cst_183 = arith.constant 1.000000e+00 : f32
    %639 = vector.broadcast %cst_183 : f32 to vector<8x128xf32>
    %640 = arith.addf %638, %639 : vector<8x128xf32>
    %cst_184 = arith.constant 0.000000e+00 : f32
    %641 = vector.broadcast %cst_184 : f32 to vector<8x128xf32>
    %642 = arith.maximumf %640, %641 : vector<8x128xf32>
    %643 = vector.broadcast %625 : f32 to vector<8x128xf32>
    %644 = arith.minimumf %10, %643 : vector<8x128xf32>
    %645 = vector.broadcast %623 : f32 to vector<8x128xf32>
    %646 = arith.maximumf %6, %645 : vector<8x128xf32>
    %647 = arith.subf %644, %646 : vector<8x128xf32>
    %cst_185 = arith.constant 1.000000e+00 : f32
    %648 = vector.broadcast %cst_185 : f32 to vector<8x128xf32>
    %649 = arith.addf %647, %648 : vector<8x128xf32>
    %cst_186 = arith.constant 0.000000e+00 : f32
    %650 = vector.broadcast %cst_186 : f32 to vector<8x128xf32>
    %651 = arith.maximumf %649, %650 : vector<8x128xf32>
    %652 = arith.mulf %642, %651 : vector<8x128xf32>
    %653 = vector.broadcast %630 : f32 to vector<8x128xf32>
    %654 = arith.addf %30, %653 : vector<8x128xf32>
    %655 = arith.subf %654, %652 : vector<8x128xf32>
    %656 = arith.divf %652, %655 : vector<8x128xf32>
    %cst_187 = arith.constant 0.000000e+00 : f32
    %657 = vector.broadcast %cst_187 : f32 to vector<8x128xf32>
    %658 = arith.select %633, %657, %656 : vector<8x128xf32>
    %cst_188 = arith.constant -1.000000e+00 : f32
    %659 = vector.broadcast %cst_188 : f32 to vector<8x128xf32>
    %660 = arith.select %35, %659, %658 : vector<8x128xi1>, vector<8x128xf32>
    %cst_189 = arith.constant -1.000000e+30 : f32
    %661 = vector.broadcast %cst_189 : f32 to vector<8x128xf32>
    %662 = arith.select %23, %660, %661 : vector<8x128xi1>, vector<8x128xf32>
    %cst_190 = arith.constant dense<0xFF800000> : vector<8xf32>
    %663 = vector.multi_reduction <maximumf>, %662, %cst_190 [1] : vector<8x128xf32> to vector<8xf32>
    %664 = vector.shape_cast %663 : vector<8xf32> to vector<8x1xf32>
    %cst_191 = arith.constant dense<0xFF800000> : vector<1xf32>
    %665 = vector.multi_reduction <maximumf>, %664, %cst_191 [0] : vector<8x1xf32> to vector<1xf32>
    %666 = vector.shape_cast %665 : vector<1xf32> to vector<1x1xf32>
    %c1_i32_192 = arith.constant 1 : i32
    %667 = vector.broadcast %c1_i32_192 : i32 to vector<2x8xi32>
    %668 = arith.cmpi eq, %36, %667 : vector<2x8xi32>
    %c3_i32_193 = arith.constant 3 : i32
    %669 = vector.broadcast %c3_i32_193 : i32 to vector<2x8xi32>
    %670 = arith.cmpi eq, %37, %669 : vector<2x8xi32>
    %671 = arith.andi %668, %670 : vector<2x8xi1>
    %672 = vector.shape_cast %666 : vector<1x1xf32> to vector<1x1xf32>
    %673 = vector.broadcast %672 : vector<1x1xf32> to vector<2x8xf32>
    %674 = arith.select %671, %673, %621 : vector<2x8xi1>, vector<2x8xf32>
    %c60 = arith.constant 60 : index
    %675 = memref.load %arg2[%c60] : memref<80xf32, #tpu.memory_space<smem>>
    %c61 = arith.constant 61 : index
    %676 = memref.load %arg2[%c61] : memref<80xf32, #tpu.memory_space<smem>>
    %c62 = arith.constant 62 : index
    %677 = memref.load %arg2[%c62] : memref<80xf32, #tpu.memory_space<smem>>
    %c63 = arith.constant 63 : index
    %678 = memref.load %arg2[%c63] : memref<80xf32, #tpu.memory_space<smem>>
    %679 = arith.subf %677, %675 : f32
    %cst_194 = arith.constant 1.000000e+00 : f32
    %680 = arith.addf %679, %cst_194 : f32
    %681 = arith.subf %678, %676 : f32
    %cst_195 = arith.constant 1.000000e+00 : f32
    %682 = arith.addf %681, %cst_195 : f32
    %683 = arith.mulf %680, %682 : f32
    %cst_196 = arith.constant 1.000000e+00 : f32
    %684 = arith.cmpf oeq, %680, %cst_196 : f32
    %cst_197 = arith.constant 1.000000e+00 : f32
    %685 = arith.cmpf oeq, %682, %cst_197 : f32
    %686 = arith.andi %684, %685 : i1
    %687 = vector.broadcast %677 : f32 to vector<8x128xf32>
    %688 = arith.minimumf %8, %687 : vector<8x128xf32>
    %689 = vector.broadcast %675 : f32 to vector<8x128xf32>
    %690 = arith.maximumf %4, %689 : vector<8x128xf32>
    %691 = arith.subf %688, %690 : vector<8x128xf32>
    %cst_198 = arith.constant 1.000000e+00 : f32
    %692 = vector.broadcast %cst_198 : f32 to vector<8x128xf32>
    %693 = arith.addf %691, %692 : vector<8x128xf32>
    %cst_199 = arith.constant 0.000000e+00 : f32
    %694 = vector.broadcast %cst_199 : f32 to vector<8x128xf32>
    %695 = arith.maximumf %693, %694 : vector<8x128xf32>
    %696 = vector.broadcast %678 : f32 to vector<8x128xf32>
    %697 = arith.minimumf %10, %696 : vector<8x128xf32>
    %698 = vector.broadcast %676 : f32 to vector<8x128xf32>
    %699 = arith.maximumf %6, %698 : vector<8x128xf32>
    %700 = arith.subf %697, %699 : vector<8x128xf32>
    %cst_200 = arith.constant 1.000000e+00 : f32
    %701 = vector.broadcast %cst_200 : f32 to vector<8x128xf32>
    %702 = arith.addf %700, %701 : vector<8x128xf32>
    %cst_201 = arith.constant 0.000000e+00 : f32
    %703 = vector.broadcast %cst_201 : f32 to vector<8x128xf32>
    %704 = arith.maximumf %702, %703 : vector<8x128xf32>
    %705 = arith.mulf %695, %704 : vector<8x128xf32>
    %706 = vector.broadcast %683 : f32 to vector<8x128xf32>
    %707 = arith.addf %30, %706 : vector<8x128xf32>
    %708 = arith.subf %707, %705 : vector<8x128xf32>
    %709 = arith.divf %705, %708 : vector<8x128xf32>
    %cst_202 = arith.constant 0.000000e+00 : f32
    %710 = vector.broadcast %cst_202 : f32 to vector<8x128xf32>
    %711 = arith.select %686, %710, %709 : vector<8x128xf32>
    %cst_203 = arith.constant -1.000000e+00 : f32
    %712 = vector.broadcast %cst_203 : f32 to vector<8x128xf32>
    %713 = arith.select %35, %712, %711 : vector<8x128xi1>, vector<8x128xf32>
    %cst_204 = arith.constant -1.000000e+30 : f32
    %714 = vector.broadcast %cst_204 : f32 to vector<8x128xf32>
    %715 = arith.select %23, %713, %714 : vector<8x128xi1>, vector<8x128xf32>
    %cst_205 = arith.constant dense<0xFF800000> : vector<8xf32>
    %716 = vector.multi_reduction <maximumf>, %715, %cst_205 [1] : vector<8x128xf32> to vector<8xf32>
    %717 = vector.shape_cast %716 : vector<8xf32> to vector<8x1xf32>
    %cst_206 = arith.constant dense<0xFF800000> : vector<1xf32>
    %718 = vector.multi_reduction <maximumf>, %717, %cst_206 [0] : vector<8x1xf32> to vector<1xf32>
    %719 = vector.shape_cast %718 : vector<1xf32> to vector<1x1xf32>
    %c1_i32_207 = arith.constant 1 : i32
    %720 = vector.broadcast %c1_i32_207 : i32 to vector<2x8xi32>
    %721 = arith.cmpi eq, %36, %720 : vector<2x8xi32>
    %c4_i32_208 = arith.constant 4 : i32
    %722 = vector.broadcast %c4_i32_208 : i32 to vector<2x8xi32>
    %723 = arith.cmpi eq, %37, %722 : vector<2x8xi32>
    %724 = arith.andi %721, %723 : vector<2x8xi1>
    %725 = vector.shape_cast %719 : vector<1x1xf32> to vector<1x1xf32>
    %726 = vector.broadcast %725 : vector<1x1xf32> to vector<2x8xf32>
    %727 = arith.select %724, %726, %674 : vector<2x8xi1>, vector<2x8xf32>
    %c65 = arith.constant 65 : index
    %728 = memref.load %arg2[%c65] : memref<80xf32, #tpu.memory_space<smem>>
    %c66 = arith.constant 66 : index
    %729 = memref.load %arg2[%c66] : memref<80xf32, #tpu.memory_space<smem>>
    %c67 = arith.constant 67 : index
    %730 = memref.load %arg2[%c67] : memref<80xf32, #tpu.memory_space<smem>>
    %c68 = arith.constant 68 : index
    %731 = memref.load %arg2[%c68] : memref<80xf32, #tpu.memory_space<smem>>
    %732 = arith.subf %730, %728 : f32
    %cst_209 = arith.constant 1.000000e+00 : f32
    %733 = arith.addf %732, %cst_209 : f32
    %734 = arith.subf %731, %729 : f32
    %cst_210 = arith.constant 1.000000e+00 : f32
    %735 = arith.addf %734, %cst_210 : f32
    %736 = arith.mulf %733, %735 : f32
    %cst_211 = arith.constant 1.000000e+00 : f32
    %737 = arith.cmpf oeq, %733, %cst_211 : f32
    %cst_212 = arith.constant 1.000000e+00 : f32
    %738 = arith.cmpf oeq, %735, %cst_212 : f32
    %739 = arith.andi %737, %738 : i1
    %740 = vector.broadcast %730 : f32 to vector<8x128xf32>
    %741 = arith.minimumf %8, %740 : vector<8x128xf32>
    %742 = vector.broadcast %728 : f32 to vector<8x128xf32>
    %743 = arith.maximumf %4, %742 : vector<8x128xf32>
    %744 = arith.subf %741, %743 : vector<8x128xf32>
    %cst_213 = arith.constant 1.000000e+00 : f32
    %745 = vector.broadcast %cst_213 : f32 to vector<8x128xf32>
    %746 = arith.addf %744, %745 : vector<8x128xf32>
    %cst_214 = arith.constant 0.000000e+00 : f32
    %747 = vector.broadcast %cst_214 : f32 to vector<8x128xf32>
    %748 = arith.maximumf %746, %747 : vector<8x128xf32>
    %749 = vector.broadcast %731 : f32 to vector<8x128xf32>
    %750 = arith.minimumf %10, %749 : vector<8x128xf32>
    %751 = vector.broadcast %729 : f32 to vector<8x128xf32>
    %752 = arith.maximumf %6, %751 : vector<8x128xf32>
    %753 = arith.subf %750, %752 : vector<8x128xf32>
    %cst_215 = arith.constant 1.000000e+00 : f32
    %754 = vector.broadcast %cst_215 : f32 to vector<8x128xf32>
    %755 = arith.addf %753, %754 : vector<8x128xf32>
    %cst_216 = arith.constant 0.000000e+00 : f32
    %756 = vector.broadcast %cst_216 : f32 to vector<8x128xf32>
    %757 = arith.maximumf %755, %756 : vector<8x128xf32>
    %758 = arith.mulf %748, %757 : vector<8x128xf32>
    %759 = vector.broadcast %736 : f32 to vector<8x128xf32>
    %760 = arith.addf %30, %759 : vector<8x128xf32>
    %761 = arith.subf %760, %758 : vector<8x128xf32>
    %762 = arith.divf %758, %761 : vector<8x128xf32>
    %cst_217 = arith.constant 0.000000e+00 : f32
    %763 = vector.broadcast %cst_217 : f32 to vector<8x128xf32>
    %764 = arith.select %739, %763, %762 : vector<8x128xf32>
    %cst_218 = arith.constant -1.000000e+00 : f32
    %765 = vector.broadcast %cst_218 : f32 to vector<8x128xf32>
    %766 = arith.select %35, %765, %764 : vector<8x128xi1>, vector<8x128xf32>
    %cst_219 = arith.constant -1.000000e+30 : f32
    %767 = vector.broadcast %cst_219 : f32 to vector<8x128xf32>
    %768 = arith.select %23, %766, %767 : vector<8x128xi1>, vector<8x128xf32>
    %cst_220 = arith.constant dense<0xFF800000> : vector<8xf32>
    %769 = vector.multi_reduction <maximumf>, %768, %cst_220 [1] : vector<8x128xf32> to vector<8xf32>
    %770 = vector.shape_cast %769 : vector<8xf32> to vector<8x1xf32>
    %cst_221 = arith.constant dense<0xFF800000> : vector<1xf32>
    %771 = vector.multi_reduction <maximumf>, %770, %cst_221 [0] : vector<8x1xf32> to vector<1xf32>
    %772 = vector.shape_cast %771 : vector<1xf32> to vector<1x1xf32>
    %c1_i32_222 = arith.constant 1 : i32
    %773 = vector.broadcast %c1_i32_222 : i32 to vector<2x8xi32>
    %774 = arith.cmpi eq, %36, %773 : vector<2x8xi32>
    %c5_i32_223 = arith.constant 5 : i32
    %775 = vector.broadcast %c5_i32_223 : i32 to vector<2x8xi32>
    %776 = arith.cmpi eq, %37, %775 : vector<2x8xi32>
    %777 = arith.andi %774, %776 : vector<2x8xi1>
    %778 = vector.shape_cast %772 : vector<1x1xf32> to vector<1x1xf32>
    %779 = vector.broadcast %778 : vector<1x1xf32> to vector<2x8xf32>
    %780 = arith.select %777, %779, %727 : vector<2x8xi1>, vector<2x8xf32>
    %c70 = arith.constant 70 : index
    %781 = memref.load %arg2[%c70] : memref<80xf32, #tpu.memory_space<smem>>
    %c71 = arith.constant 71 : index
    %782 = memref.load %arg2[%c71] : memref<80xf32, #tpu.memory_space<smem>>
    %c72 = arith.constant 72 : index
    %783 = memref.load %arg2[%c72] : memref<80xf32, #tpu.memory_space<smem>>
    %c73 = arith.constant 73 : index
    %784 = memref.load %arg2[%c73] : memref<80xf32, #tpu.memory_space<smem>>
    %785 = arith.subf %783, %781 : f32
    %cst_224 = arith.constant 1.000000e+00 : f32
    %786 = arith.addf %785, %cst_224 : f32
    %787 = arith.subf %784, %782 : f32
    %cst_225 = arith.constant 1.000000e+00 : f32
    %788 = arith.addf %787, %cst_225 : f32
    %789 = arith.mulf %786, %788 : f32
    %cst_226 = arith.constant 1.000000e+00 : f32
    %790 = arith.cmpf oeq, %786, %cst_226 : f32
    %cst_227 = arith.constant 1.000000e+00 : f32
    %791 = arith.cmpf oeq, %788, %cst_227 : f32
    %792 = arith.andi %790, %791 : i1
    %793 = vector.broadcast %783 : f32 to vector<8x128xf32>
    %794 = arith.minimumf %8, %793 : vector<8x128xf32>
    %795 = vector.broadcast %781 : f32 to vector<8x128xf32>
    %796 = arith.maximumf %4, %795 : vector<8x128xf32>
    %797 = arith.subf %794, %796 : vector<8x128xf32>
    %cst_228 = arith.constant 1.000000e+00 : f32
    %798 = vector.broadcast %cst_228 : f32 to vector<8x128xf32>
    %799 = arith.addf %797, %798 : vector<8x128xf32>
    %cst_229 = arith.constant 0.000000e+00 : f32
    %800 = vector.broadcast %cst_229 : f32 to vector<8x128xf32>
    %801 = arith.maximumf %799, %800 : vector<8x128xf32>
    %802 = vector.broadcast %784 : f32 to vector<8x128xf32>
    %803 = arith.minimumf %10, %802 : vector<8x128xf32>
    %804 = vector.broadcast %782 : f32 to vector<8x128xf32>
    %805 = arith.maximumf %6, %804 : vector<8x128xf32>
    %806 = arith.subf %803, %805 : vector<8x128xf32>
    %cst_230 = arith.constant 1.000000e+00 : f32
    %807 = vector.broadcast %cst_230 : f32 to vector<8x128xf32>
    %808 = arith.addf %806, %807 : vector<8x128xf32>
    %cst_231 = arith.constant 0.000000e+00 : f32
    %809 = vector.broadcast %cst_231 : f32 to vector<8x128xf32>
    %810 = arith.maximumf %808, %809 : vector<8x128xf32>
    %811 = arith.mulf %801, %810 : vector<8x128xf32>
    %812 = vector.broadcast %789 : f32 to vector<8x128xf32>
    %813 = arith.addf %30, %812 : vector<8x128xf32>
    %814 = arith.subf %813, %811 : vector<8x128xf32>
    %815 = arith.divf %811, %814 : vector<8x128xf32>
    %cst_232 = arith.constant 0.000000e+00 : f32
    %816 = vector.broadcast %cst_232 : f32 to vector<8x128xf32>
    %817 = arith.select %792, %816, %815 : vector<8x128xf32>
    %cst_233 = arith.constant -1.000000e+00 : f32
    %818 = vector.broadcast %cst_233 : f32 to vector<8x128xf32>
    %819 = arith.select %35, %818, %817 : vector<8x128xi1>, vector<8x128xf32>
    %cst_234 = arith.constant -1.000000e+30 : f32
    %820 = vector.broadcast %cst_234 : f32 to vector<8x128xf32>
    %821 = arith.select %23, %819, %820 : vector<8x128xi1>, vector<8x128xf32>
    %cst_235 = arith.constant dense<0xFF800000> : vector<8xf32>
    %822 = vector.multi_reduction <maximumf>, %821, %cst_235 [1] : vector<8x128xf32> to vector<8xf32>
    %823 = vector.shape_cast %822 : vector<8xf32> to vector<8x1xf32>
    %cst_236 = arith.constant dense<0xFF800000> : vector<1xf32>
    %824 = vector.multi_reduction <maximumf>, %823, %cst_236 [0] : vector<8x1xf32> to vector<1xf32>
    %825 = vector.shape_cast %824 : vector<1xf32> to vector<1x1xf32>
    %c1_i32_237 = arith.constant 1 : i32
    %826 = vector.broadcast %c1_i32_237 : i32 to vector<2x8xi32>
    %827 = arith.cmpi eq, %36, %826 : vector<2x8xi32>
    %c6_i32_238 = arith.constant 6 : i32
    %828 = vector.broadcast %c6_i32_238 : i32 to vector<2x8xi32>
    %829 = arith.cmpi eq, %37, %828 : vector<2x8xi32>
    %830 = arith.andi %827, %829 : vector<2x8xi1>
    %831 = vector.shape_cast %825 : vector<1x1xf32> to vector<1x1xf32>
    %832 = vector.broadcast %831 : vector<1x1xf32> to vector<2x8xf32>
    %833 = arith.select %830, %832, %780 : vector<2x8xi1>, vector<2x8xf32>
    %c75 = arith.constant 75 : index
    %834 = memref.load %arg2[%c75] : memref<80xf32, #tpu.memory_space<smem>>
    %c76 = arith.constant 76 : index
    %835 = memref.load %arg2[%c76] : memref<80xf32, #tpu.memory_space<smem>>
    %c77 = arith.constant 77 : index
    %836 = memref.load %arg2[%c77] : memref<80xf32, #tpu.memory_space<smem>>
    %c78 = arith.constant 78 : index
    %837 = memref.load %arg2[%c78] : memref<80xf32, #tpu.memory_space<smem>>
    %838 = arith.subf %836, %834 : f32
    %cst_239 = arith.constant 1.000000e+00 : f32
    %839 = arith.addf %838, %cst_239 : f32
    %840 = arith.subf %837, %835 : f32
    %cst_240 = arith.constant 1.000000e+00 : f32
    %841 = arith.addf %840, %cst_240 : f32
    %842 = arith.mulf %839, %841 : f32
    %cst_241 = arith.constant 1.000000e+00 : f32
    %843 = arith.cmpf oeq, %839, %cst_241 : f32
    %cst_242 = arith.constant 1.000000e+00 : f32
    %844 = arith.cmpf oeq, %841, %cst_242 : f32
    %845 = arith.andi %843, %844 : i1
    %846 = vector.broadcast %836 : f32 to vector<8x128xf32>
    %847 = arith.minimumf %8, %846 : vector<8x128xf32>
    %848 = vector.broadcast %834 : f32 to vector<8x128xf32>
    %849 = arith.maximumf %4, %848 : vector<8x128xf32>
    %850 = arith.subf %847, %849 : vector<8x128xf32>
    %cst_243 = arith.constant 1.000000e+00 : f32
    %851 = vector.broadcast %cst_243 : f32 to vector<8x128xf32>
    %852 = arith.addf %850, %851 : vector<8x128xf32>
    %cst_244 = arith.constant 0.000000e+00 : f32
    %853 = vector.broadcast %cst_244 : f32 to vector<8x128xf32>
    %854 = arith.maximumf %852, %853 : vector<8x128xf32>
    %855 = vector.broadcast %837 : f32 to vector<8x128xf32>
    %856 = arith.minimumf %10, %855 : vector<8x128xf32>
    %857 = vector.broadcast %835 : f32 to vector<8x128xf32>
    %858 = arith.maximumf %6, %857 : vector<8x128xf32>
    %859 = arith.subf %856, %858 : vector<8x128xf32>
    %cst_245 = arith.constant 1.000000e+00 : f32
    %860 = vector.broadcast %cst_245 : f32 to vector<8x128xf32>
    %861 = arith.addf %859, %860 : vector<8x128xf32>
    %cst_246 = arith.constant 0.000000e+00 : f32
    %862 = vector.broadcast %cst_246 : f32 to vector<8x128xf32>
    %863 = arith.maximumf %861, %862 : vector<8x128xf32>
    %864 = arith.mulf %854, %863 : vector<8x128xf32>
    %865 = vector.broadcast %842 : f32 to vector<8x128xf32>
    %866 = arith.addf %30, %865 : vector<8x128xf32>
    %867 = arith.subf %866, %864 : vector<8x128xf32>
    %868 = arith.divf %864, %867 : vector<8x128xf32>
    %cst_247 = arith.constant 0.000000e+00 : f32
    %869 = vector.broadcast %cst_247 : f32 to vector<8x128xf32>
    %870 = arith.select %845, %869, %868 : vector<8x128xf32>
    %cst_248 = arith.constant -1.000000e+00 : f32
    %871 = vector.broadcast %cst_248 : f32 to vector<8x128xf32>
    %872 = arith.select %35, %871, %870 : vector<8x128xi1>, vector<8x128xf32>
    %cst_249 = arith.constant -1.000000e+30 : f32
    %873 = vector.broadcast %cst_249 : f32 to vector<8x128xf32>
    %874 = arith.select %23, %872, %873 : vector<8x128xi1>, vector<8x128xf32>
    %cst_250 = arith.constant dense<0xFF800000> : vector<8xf32>
    %875 = vector.multi_reduction <maximumf>, %874, %cst_250 [1] : vector<8x128xf32> to vector<8xf32>
    %876 = vector.shape_cast %875 : vector<8xf32> to vector<8x1xf32>
    %cst_251 = arith.constant dense<0xFF800000> : vector<1xf32>
    %877 = vector.multi_reduction <maximumf>, %876, %cst_251 [0] : vector<8x1xf32> to vector<1xf32>
    %878 = vector.shape_cast %877 : vector<1xf32> to vector<1x1xf32>
    %c1_i32_252 = arith.constant 1 : i32
    %879 = vector.broadcast %c1_i32_252 : i32 to vector<2x8xi32>
    %880 = arith.cmpi eq, %36, %879 : vector<2x8xi32>
    %c7_i32_253 = arith.constant 7 : i32
    %881 = vector.broadcast %c7_i32_253 : i32 to vector<2x8xi32>
    %882 = arith.cmpi eq, %37, %881 : vector<2x8xi32>
    %883 = arith.andi %880, %882 : vector<2x8xi1>
    %884 = vector.shape_cast %878 : vector<1x1xf32> to vector<1x1xf32>
    %885 = vector.broadcast %884 : vector<1x1xf32> to vector<2x8xf32>
    %886 = arith.select %883, %885, %833 : vector<2x8xi1>, vector<2x8xf32>
    %c0_254 = arith.constant 0 : index
    %c0_255 = arith.constant 0 : index
    %887 = vector.load %arg4[%c0_254, %c0_255] : memref<2x8xf32, #tpu.memory_space<vmem>>, vector<2x8xf32>
    %888 = arith.maximumf %887, %886 : vector<2x8xf32>
    %c0_256 = arith.constant 0 : index
    %c0_257 = arith.constant 0 : index
    %889 = vector.load %arg4[%c0_256, %c0_257] : memref<2x8xf32, #tpu.memory_space<vmem>>, vector<2x8xf32>
    tpu.vector_store %arg4[%c0_256, %c0_257], %888 {strides = array<i32>} : memref<2x8xf32, #tpu.memory_space<vmem>>, vector<2x8xf32>,
    return
  }
  func.func @transform_0(%arg0: i32) -> i32 {
    %c0_i32 = arith.constant 0 : i32
    %c0_i32_0 = arith.constant 0 : i32
    return %c0_i32 : i32
  }
  func.func @transform_1(%arg0: i32) -> i32 {
    %c0_i32 = arith.constant 0 : i32
    %c0_i32_0 = arith.constant 0 : i32
    return %c0_i32 : i32
  }
  func.func @transform_2(%arg0: i32) -> (i32, i32, i32) {
    %c0_i32 = arith.constant 0 : i32
    %c0_i32_0 = arith.constant 0 : i32
    %c0_i32_1 = arith.constant 0 : i32
    return %c0_i32, %arg0, %c0_i32_0 : i32, i32, i32
  }
  func.func @transform_3(%arg0: i32) -> (i32, i32) {
    %c0_i32 = arith.constant 0 : i32
    %c0_i32_0 = arith.constant 0 : i32
    %c0_i32_1 = arith.constant 0 : i32
    return %c0_i32, %c0_i32_0 : i32, i32
  }
}

</mosaic_0001>

<llo_original>
// kernel: tpu_custom_call.1
$region0: #{tpu_custom_call.1}
  #allocation0 [shape = 'u32[]', space=smem, size = 0x4, offset = 0x4, fixed_abs, tag = 'smem constant byte address 0x4 - core index']
  #allocation1 [shape = 'u32[144,128]{1,0:T(1,128)}', space=vmem, size = 0x12000, scoped, tag = 'internal scratch']
  %s0 = inlined_call_operand.hbm [shape: f32[2], index: 0, kind: input, shape index: {}]
  %s1 = inlined_call_operand.vmem [shape: f32[80], index: 1, kind: input, shape index: {}]
  %s2 = inlined_call_operand.hbm [shape: f32[4,8,128], index: 2, kind: input, shape index: {}]
  %s3 = inlined_call_operand.hbm [shape: f32[2,8], index: 3, kind: output, shape index: {}]
  %s4 = sld [smem:[#allocation0]]
  $region38: #{tpu_custom_call.1} parent=0
    _
  %s6 = ssub.s32 1, %s4
  %s7 = scalar_select 0, %s6, %s4
  $region1: #{tpu_custom_call.1} parent=0
    #allocation2 [shape = 'u8[512]{0}', space=smem, size = 0x200, scoped, tag = 'input window, operand 0, single buffered']
    #allocation3 [shape = 's32[1]{0}', space=sflag, size = 0x4, scoped, tag = 'scoped memory for tpu_custom_call.1']
    #allocation4 [shape = 's32[1]{0}', space=sflag, size = 0x4, scoped, tag = 'scoped memory for tpu_custom_call.1']
    #allocation5 [shape = 's32[1]{0}', space=sflag, size = 0x4, scoped, tag = 'scoped memory for tpu_custom_call.1']
    #allocation6 [shape = 's32[1]{0}', space=sflag, size = 0x4, scoped, tag = 'scoped memory for tpu_custom_call.1']
    #allocation7 [shape = 'u8[512]{0}', space=smem, size = 0x200, scoped, tag = 'input window, operand 1, single buffered']
    #allocation8 [shape = 'u8[16384]{0}', space=vmem, size = 0x4000, scoped, tag = 'input window, operand 2, single buffered']
    #allocation9 [shape = 'u8[1024]{0}', space=vmem, size = 0x400, scoped, tag = 'output window, operand 0, single buffered']
    %8 = vsyncpa [#allocation5], 0
    %9 = vsyncpa [#allocation6], 0
    %10 = vsyncpa [#allocation3], 0
    %11 = vsyncpa [#allocation4], 0
    // Predicated region
    $region2: #{tpu_custom_call.1} parent=1 // pred_check
      _
    $region3: #{tpu_custom_call.1} parent=1 // pred_check_branch
      %13 = sbr.rel (0) target = $region5
    $region4: #{tpu_custom_call.1} parent=1 // pred_region
      %s15 = ssub.s32 16, 16
      %16 = vsyncadd [#allocation5], %s15
      %19 = dma.hbm_to_smem %s0, 16, [#allocation2], [#allocation5]
    $region5: #{tpu_custom_call.1} parent=1 // pred_fallthru
      _
    // Predicated region
    $region6: #{tpu_custom_call.1} parent=1 // pred_check
      _
    $region7: #{tpu_custom_call.1} parent=1 // pred_check_branch
      %21 = sbr.rel (0) target = $region9
    $region8: #{tpu_custom_call.1} parent=1 // pred_region
      %s23 = ssub.s32 16, 16
      %24 = vsyncadd [#allocation6], %s23
      %s26 = sshll.u32 %s1, 4
      %s27 = int_to_ptr.vmem [resolvable:$true] %s26
      %29 = dma.vmem_to_smem %s27, 16, [#allocation7], [#allocation6]
    $region9: #{tpu_custom_call.1} parent=1 // pred_fallthru
      _
    // Predicated region
    $region10: #{tpu_custom_call.1} parent=1 // pred_check
      _
    $region11: #{tpu_custom_call.1} parent=1 // pred_check_branch
      %31 = sbr.rel (0) target = $region13
    $region12: #{tpu_custom_call.1} parent=1 // pred_region
      %s33 = ssub.s32 512, 512
      %34 = vsyncadd [#allocation3], %s33
      %s35 = sshll.u32 [#allocation8], 4
      %s36 = int_to_ptr.vmem [resolvable:$true] %s35
      %41 = dma.hbm_to_vmem [thread:$0]  %s2, 512, %s36, [#allocation3], 128, 128, 8
    $region13: #{tpu_custom_call.1} parent=1 // pred_fallthru
      _
    // Predicated region
    $region14: #{tpu_custom_call.1} parent=1 // pred_check
      _
    $region15: #{tpu_custom_call.1} parent=1 // pred_check_branch
      %43 = sbr.rel (0) target = $region17
    $region16: #{tpu_custom_call.1} parent=1 // pred_region
      %44 = dma.done [#allocation5], 16
    $region17: #{tpu_custom_call.1} parent=1 // pred_fallthru
      _
    // Predicated region
    $region18: #{tpu_custom_call.1} parent=1 // pred_check
      _
    $region19: #{tpu_custom_call.1} parent=1 // pred_check_branch
      %46 = sbr.rel (0) target = $region21
    $region20: #{tpu_custom_call.1} parent=1 // pred_region
      %47 = dma.done [#allocation6], 16
    $region21: #{tpu_custom_call.1} parent=1 // pred_fallthru
      _
    // Predicated region
    $region22: #{tpu_custom_call.1} parent=1 // pred_check
      _
    $region23: #{tpu_custom_call.1} parent=1 // pred_check_branch
      %49 = sbr.rel (0) target = $region25
    $region24: #{tpu_custom_call.1} parent=1 // pred_region
      %50 = dma.done [#allocation3], 512
    $region25: #{tpu_custom_call.1} parent=1 // pred_fallthru
      _
    %51 = sfence
    %p52 = scmp.eq.s32.totalorder 0, 0
    // Predicated region
    $region26: #{tpu_custom_call.1} parent=1 // pred_check
      %p53 = pneg %p52
    $region27: #{tpu_custom_call.1} parent=1 // pred_check_branch
      %55 = sbr.rel (%p53) target = $region29
    $region28: #{tpu_custom_call.1} parent=1 // pred_region
      %vm56 = vcmask 58368
      %57 = vst.msk [vmem:[#allocation9] sm:$0x3] %vm56, -1e+30
    $region29: #{tpu_custom_call.1} parent=1 // pred_fallthru
      _
    %v58 = vld [vmem:[#allocation8] sm:$0xff]
    %s59 = scalar_lea.vmem [#allocation8], 8
    %v60 = vld [vmem:[%s59] sm:$0xff]
    %s61 = scalar_lea.vmem [#allocation8], 16
    %v62 = vld [vmem:[%s61] sm:$0xff]
    %s63 = scalar_lea.vmem [#allocation8], 24
    %v64 = vld [vmem:[%s63] sm:$0xff]
    %s65 = sld [smem:[#allocation2]]
    %s66 = sld [smem:[#allocation2 + $0x1]]
    %vm67 = vcmp.ge.f32.partialorder %v58, 0.0
    %vm68 = vcmp.ge.f32.partialorder %v60, 0.0
    %vm69 = vmand %vm67, %vm68
    %v70 = vstv %s66
    %vm71 = vcmp.lt.f32.partialorder %v62, %v70
    %vm72 = vmand %vm69, %vm71
    %v73 = vstv %s65
    %vm74 = vcmp.lt.f32.partialorder %v64, %v73
    %vm75 = vmand %vm72, %vm74
    %v76 = vsub.f32 %v62, %v58
    %v77 = vadd.f32 %v76, 1.0
    %v78 = vsub.f32 %v64, %v60
    %v79 = vadd.f32 %v78, 1.0
    %v80 = vmul.f32 %v77, %v79
    %vm81 = vcmp.eq.f32.partialorder %v77, 1.0
    %vm82 = vcmp.eq.f32.partialorder %v79, 1.0
    %vm83 = vmand %vm81, %vm82
    %v84 = vlaneseq
    %v85 = vshrl.u32 %v84, 7
    %v86 = vlaneseq
    %v87 = vand.u32 %v86, 127
    %s88 = sld [smem:[#allocation7]]
    %s89 = sld [smem:[#allocation7 + $0x1]]
    %s90 = sld [smem:[#allocation7 + $0x2]]
    %s91 = sld [smem:[#allocation7 + $0x3]]
    %s92 = ssub.f32 %s90, %s88
    %s93 = sadd.f32 %s92, 1.0
    %s94 = ssub.f32 %s91, %s89
    %s95 = sadd.f32 %s94, 1.0
    %s96 = smul.f32 %s93, %s95
    %p97 = scmp.eq.f32.partialorder %s93, 1.0
    %p98 = scmp.eq.f32.partialorder %s95, 1.0
    %p99 = pnand %p97, %p98
    %p100 = pneg %p99
    %v101 = vstv %s90
    %v102 = vmin.f32 %v62, %v101
    %v103 = vstv %s88
    %v104 = vmax.f32 %v58, %v103
    %v105 = vsub.f32 %v102, %v104
    %v106 = vadd.f32 %v105, 1.0
    %v107 = vmax.f32 %v106, 0.0
    %v108 = vstv %s91
    %v109 = vmin.f32 %v64, %v108
    %v110 = vstv %s89
    %v111 = vmax.f32 %v60, %v110
    %v112 = vsub.f32 %v109, %v111
    %v113 = vadd.f32 %v112, 1.0
    %v114 = vmax.f32 %v113, 0.0
    %v115 = vmul.f32 %v107, %v114
    %v116 = vstv %s96
    %v117 = vadd.f32 %v80, %v116
    %v118 = vsub.f32 %v117, %v115
    %v119 = vrcp.pop %v118
    %v120 = vmul.f32 %v115, %v119
    %s121 = scalar_select %p100, 1, 0
    %v122 = vstv %s121
    %vm123 = vcmp.eq.s32.totalorder %v122, 1
    %v124 = vsel %vm123, 0.0, %v120
    %v125 = vsel %vm83, -1.0, %v124
    %v126 = vsel %vm75, %v125, -1e+30
    %127 = vmax.xlane.f32.xlu0 %v126
    %v128 = vpop.xlane.xlu0 %127
    %v129 = vrot.slane %v128, 4
    %v130 = vmax.f32 %v128, %v129
    %v131 = vrot.slane %v130, 2
    %v132 = vmax.f32 %v130, %v131
    %v133 = vrot.slane %v132, 1
    %v134 = vmax.f32 %v132, %v133
    %vm135 = vcmp.eq.s32.totalorder %v85, 0
    %vm136 = vcmp.eq.s32.totalorder %v87, 0
    %vm137 = vmand %vm135, %vm136
    %v138 = vsel %vm137, %v134, -1e+30
    %s139 = sld [smem:[#allocation7 + $0x5]]
    %s140 = sld [smem:[#allocation7 + $0x6]]
    %s141 = sld [smem:[#allocation7 + $0x7]]
    %s142 = sld [smem:[#allocation7 + $0x8]]
    %s143 = ssub.f32 %s141, %s139
    %s144 = sadd.f32 %s143, 1.0
    %s145 = ssub.f32 %s142, %s140
    %s146 = sadd.f32 %s145, 1.0
    %s147 = smul.f32 %s144, %s146
    %p148 = scmp.eq.f32.partialorder %s144, 1.0
    %p149 = scmp.eq.f32.partialorder %s146, 1.0
    %p150 = pnand %p148, %p149
    %p151 = pneg %p150
    %v152 = vstv %s141
    %v153 = vmin.f32 %v62, %v152
    %v154 = vstv %s139
    %v155 = vmax.f32 %v58, %v154
    %v156 = vsub.f32 %v153, %v155
    %v157 = vadd.f32 %v156, 1.0
    %v158 = vmax.f32 %v157, 0.0
    %v159 = vstv %s142
    %v160 = vmin.f32 %v64, %v159
    %v161 = vstv %s140
    %v162 = vmax.f32 %v60, %v161
    %v163 = vsub.f32 %v160, %v162
    %v164 = vadd.f32 %v163, 1.0
    %v165 = vmax.f32 %v164, 0.0
    %v166 = vmul.f32 %v158, %v165
    %v167 = vstv %s147
    %v168 = vadd.f32 %v80, %v167
    %v169 = vsub.f32 %v168, %v166
    %v170 = vrcp.pop %v169
    %v171 = vmul.f32 %v166, %v170
    %s172 = scalar_select %p151, 1, 0
    %v173 = vstv %s172
    %vm174 = vcmp.eq.s32.totalorder %v173, 1
    %v175 = vsel %vm174, 0.0, %v171
    %v176 = vsel %vm83, -1.0, %v175
    %v177 = vsel %vm75, %v176, -1e+30
    %178 = vmax.xlane.f32.xlu0 %v177
    %v179 = vpop.xlane.xlu0 %178
    %v180 = vrot.slane %v179, 4
    %v181 = vmax.f32 %v179, %v180
    %v182 = vrot.slane %v181, 2
    %v183 = vmax.f32 %v181, %v182
    %v184 = vrot.slane %v183, 1
    %v185 = vmax.f32 %v183, %v184
    %vm186 = vcmp.eq.s32.totalorder %v87, 1
    %vm187 = vmand %vm135, %vm186
    %v188 = vsel %vm187, %v185, %v138
    %s189 = sld [smem:[#allocation7 + $0xa]]
    %s190 = sld [smem:[#allocation7 + $0xb]]
    %s191 = sld [smem:[#allocation7 + $0xc]]
    %s192 = sld [smem:[#allocation7 + $0xd]]
    %s193 = ssub.f32 %s191, %s189
    %s194 = sadd.f32 %s193, 1.0
    %s195 = ssub.f32 %s192, %s190
    %s196 = sadd.f32 %s195, 1.0
    %s197 = smul.f32 %s194, %s196
    %p198 = scmp.eq.f32.partialorder %s194, 1.0
    %p199 = scmp.eq.f32.partialorder %s196, 1.0
    %p200 = pnand %p198, %p199
    %p201 = pneg %p200
    %v202 = vstv %s191
    %v203 = vmin.f32 %v62, %v202
    %v204 = vstv %s189
    %v205 = vmax.f32 %v58, %v204
    %v206 = vsub.f32 %v203, %v205
    %v207 = vadd.f32 %v206, 1.0
    %v208 = vmax.f32 %v207, 0.0
    %v209 = vstv %s192
    %v210 = vmin.f32 %v64, %v209
    %v211 = vstv %s190
    %v212 = vmax.f32 %v60, %v211
    %v213 = vsub.f32 %v210, %v212
    %v214 = vadd.f32 %v213, 1.0
    %v215 = vmax.f32 %v214, 0.0
    %v216 = vmul.f32 %v208, %v215
    %v217 = vstv %s197
    %v218 = vadd.f32 %v80, %v217
    %v219 = vsub.f32 %v218, %v216
    %v220 = vrcp.pop %v219
    %v221 = vmul.f32 %v216, %v220
    %s222 = scalar_select %p201, 1, 0
    %v223 = vstv %s222
    %vm224 = vcmp.eq.s32.totalorder %v223, 1
    %v225 = vsel %vm224, 0.0, %v221
    %v226 = vsel %vm83, -1.0, %v225
    %v227 = vsel %vm75, %v226, -1e+30
    %228 = vmax.xlane.f32.xlu0 %v227
    %v229 = vpop.xlane.xlu0 %228
    %v230 = vrot.slane %v229, 4
    %v231 = vmax.f32 %v229, %v230
    %v232 = vrot.slane %v231, 2
    %v233 = vmax.f32 %v231, %v232
    %v234 = vrot.slane %v233, 1
    %v235 = vmax.f32 %v233, %v234
    %vm236 = vcmp.eq.s32.totalorder %v87, 2
    %vm237 = vmand %vm135, %vm236
    %v238 = vsel %vm237, %v235, %v188
    %s239 = sld [smem:[#allocation7 + $0xf]]
    %s240 = sld [smem:[#allocation7 + $0x10]]
    %s241 = sld [smem:[#allocation7 + $0x11]]
    %s242 = sld [smem:[#allocation7 + $0x12]]
    %s243 = ssub.f32 %s241, %s239
    %s244 = sadd.f32 %s243, 1.0
    %s245 = ssub.f32 %s242, %s240
    %s246 = sadd.f32 %s245, 1.0
    %s247 = smul.f32 %s244, %s246
    %p248 = scmp.eq.f32.partialorder %s244, 1.0
    %p249 = scmp.eq.f32.partialorder %s246, 1.0
    %p250 = pnand %p248, %p249
    %p251 = pneg %p250
    %v252 = vstv %s241
    %v253 = vmin.f32 %v62, %v252
    %v254 = vstv %s239
    %v255 = vmax.f32 %v58, %v254
    %v256 = vsub.f32 %v253, %v255
    %v257 = vadd.f32 %v256, 1.0
    %v258 = vmax.f32 %v257, 0.0
    %v259 = vstv %s242
    %v260 = vmin.f32 %v64, %v259
    %v261 = vstv %s240
    %v262 = vmax.f32 %v60, %v261
    %v263 = vsub.f32 %v260, %v262
    %v264 = vadd.f32 %v263, 1.0
    %v265 = vmax.f32 %v264, 0.0
    %v266 = vmul.f32 %v258, %v265
    %v267 = vstv %s247
    %v268 = vadd.f32 %v80, %v267
    %v269 = vsub.f32 %v268, %v266
    %v270 = vrcp.pop %v269
    %v271 = vmul.f32 %v266, %v270
    %s272 = scalar_select %p251, 1, 0
    %v273 = vstv %s272
    %vm274 = vcmp.eq.s32.totalorder %v273, 1
    %v275 = vsel %vm274, 0.0, %v271
    %v276 = vsel %vm83, -1.0, %v275
    %v277 = vsel %vm75, %v276, -1e+30
    %278 = vmax.xlane.f32.xlu0 %v277
    %v279 = vpop.xlane.xlu0 %278
    %v280 = vrot.slane %v279, 4
    %v281 = vmax.f32 %v279, %v280
    %v282 = vrot.slane %v281, 2
    %v283 = vmax.f32 %v281, %v282
    %v284 = vrot.slane %v283, 1
    %v285 = vmax.f32 %v283, %v284
    %vm286 = vcmp.eq.s32.totalorder %v87, 3
    %vm287 = vmand %vm135, %vm286
    %v288 = vsel %vm287, %v285, %v238
    %s289 = sld [smem:[#allocation7 + $0x14]]
    %s290 = sld [smem:[#allocation7 + $0x15]]
    %s291 = sld [smem:[#allocation7 + $0x16]]
    %s292 = sld [smem:[#allocation7 + $0x17]]
    %s293 = ssub.f32 %s291, %s289
    %s294 = sadd.f32 %s293, 1.0
    %s295 = ssub.f32 %s292, %s290
    %s296 = sadd.f32 %s295, 1.0
    %s297 = smul.f32 %s294, %s296
    %p298 = scmp.eq.f32.partialorder %s294, 1.0
    %p299 = scmp.eq.f32.partialorder %s296, 1.0
    %p300 = pnand %p298, %p299
    %p301 = pneg %p300
    %v302 = vstv %s291
    %v303 = vmin.f32 %v62, %v302
    %v304 = vstv %s289
    %v305 = vmax.f32 %v58, %v304
    %v306 = vsub.f32 %v303, %v305
    %v307 = vadd.f32 %v306, 1.0
    %v308 = vmax.f32 %v307, 0.0
    %v309 = vstv %s292
    %v310 = vmin.f32 %v64, %v309
    %v311 = vstv %s290
    %v312 = vmax.f32 %v60, %v311
    %v313 = vsub.f32 %v310, %v312
    %v314 = vadd.f32 %v313, 1.0
    %v315 = vmax.f32 %v314, 0.0
    %v316 = vmul.f32 %v308, %v315
    %v317 = vstv %s297
    %v318 = vadd.f32 %v80, %v317
    %v319 = vsub.f32 %v318, %v316
    %v320 = vrcp.pop %v319
    %v321 = vmul.f32 %v316, %v320
    %s322 = scalar_select %p301, 1, 0
    %v323 = vstv %s322
    %vm324 = vcmp.eq.s32.totalorder %v323, 1
    %v325 = vsel %vm324, 0.0, %v321
    %v326 = vsel %vm83, -1.0, %v325
    %v327 = vsel %vm75, %v326, -1e+30
    %328 = vmax.xlane.f32.xlu0 %v327
    %v329 = vpop.xlane.xlu0 %328
    %v330 = vrot.slane %v329, 4
    %v331 = vmax.f32 %v329, %v330
    %v332 = vrot.slane %v331, 2
    %v333 = vmax.f32 %v331, %v332
    %v334 = vrot.slane %v333, 1
    %v335 = vmax.f32 %v333, %v334
    %vm336 = vcmp.eq.s32.totalorder %v87, 4
    %vm337 = vmand %vm135, %vm336
    %v338 = vsel %vm337, %v335, %v288
    %s339 = sld [smem:[#allocation7 + $0x19]]
    %s340 = sld [smem:[#allocation7 + $0x1a]]
    %s341 = sld [smem:[#allocation7 + $0x1b]]
    %s342 = sld [smem:[#allocation7 + $0x1c]]
    %s343 = ssub.f32 %s341, %s339
    %s344 = sadd.f32 %s343, 1.0
    %s345 = ssub.f32 %s342, %s340
    %s346 = sadd.f32 %s345, 1.0
    %s347 = smul.f32 %s344, %s346
    %p348 = scmp.eq.f32.partialorder %s344, 1.0
    %p349 = scmp.eq.f32.partialorder %s346, 1.0
    %p350 = pnand %p348, %p349
    %p351 = pneg %p350
    %v352 = vstv %s341
    %v353 = vmin.f32 %v62, %v352
    %v354 = vstv %s339
    %v355 = vmax.f32 %v58, %v354
    %v356 = vsub.f32 %v353, %v355
    %v357 = vadd.f32 %v356, 1.0
    %v358 = vmax.f32 %v357, 0.0
    %v359 = vstv %s342
    %v360 = vmin.f32 %v64, %v359
    %v361 = vstv %s340
    %v362 = vmax.f32 %v60, %v361
    %v363 = vsub.f32 %v360, %v362
    %v364 = vadd.f32 %v363, 1.0
    %v365 = vmax.f32 %v364, 0.0
    %v366 = vmul.f32 %v358, %v365
    %v367 = vstv %s347
    %v368 = vadd.f32 %v80, %v367
    %v369 = vsub.f32 %v368, %v366
    %v370 = vrcp.pop %v369
    %v371 = vmul.f32 %v366, %v370
    %s372 = scalar_select %p351, 1, 0
    %v373 = vstv %s372
    %vm374 = vcmp.eq.s32.totalorder %v373, 1
    %v375 = vsel %vm374, 0.0, %v371
    %v376 = vsel %vm83, -1.0, %v375
    %v377 = vsel %vm75, %v376, -1e+30
    %378 = vmax.xlane.f32.xlu0 %v377
    %v379 = vpop.xlane.xlu0 %378
    %v380 = vrot.slane %v379, 4
    %v381 = vmax.f32 %v379, %v380
    %v382 = vrot.slane %v381, 2
    %v383 = vmax.f32 %v381, %v382
    %v384 = vrot.slane %v383, 1
    %v385 = vmax.f32 %v383, %v384
    %vm386 = vcmp.eq.s32.totalorder %v87, 5
    %vm387 = vmand %vm135, %vm386
    %v388 = vsel %vm387, %v385, %v338
    %s389 = sld [smem:[#allocation7 + $0x1e]]
    %s390 = sld [smem:[#allocation7 + $0x1f]]
    %s391 = sld [smem:[#allocation7 + $0x20]]
    %s392 = sld [smem:[#allocation7 + $0x21]]
    %s393 = ssub.f32 %s391, %s389
    %s394 = sadd.f32 %s393, 1.0
    %s395 = ssub.f32 %s392, %s390
    %s396 = sadd.f32 %s395, 1.0
    %s397 = smul.f32 %s394, %s396
    %p398 = scmp.eq.f32.partialorder %s394, 1.0
    %p399 = scmp.eq.f32.partialorder %s396, 1.0
    %p400 = pnand %p398, %p399
    %p401 = pneg %p400
    %v402 = vstv %s391
    %v403 = vmin.f32 %v62, %v402
    %v404 = vstv %s389
    %v405 = vmax.f32 %v58, %v404
    %v406 = vsub.f32 %v403, %v405
    %v407 = vadd.f32 %v406, 1.0
    %v408 = vmax.f32 %v407, 0.0
    %v409 = vstv %s392
    %v410 = vmin.f32 %v64, %v409
    %v411 = vstv %s390
    %v412 = vmax.f32 %v60, %v411
    %v413 = vsub.f32 %v410, %v412
    %v414 = vadd.f32 %v413, 1.0
    %v415 = vmax.f32 %v414, 0.0
    %v416 = vmul.f32 %v408, %v415
    %v417 = vstv %s397
    %v418 = vadd.f32 %v80, %v417
    %v419 = vsub.f32 %v418, %v416
    %v420 = vrcp.pop %v419
    %v421 = vmul.f32 %v416, %v420
    %s422 = scalar_select %p401, 1, 0
    %v423 = vstv %s422
    %vm424 = vcmp.eq.s32.totalorder %v423, 1
    %v425 = vsel %vm424, 0.0, %v421
    %v426 = vsel %vm83, -1.0, %v425
    %v427 = vsel %vm75, %v426, -1e+30
    %428 = vmax.xlane.f32.xlu0 %v427
    %v429 = vpop.xlane.xlu0 %428
    %v430 = vrot.slane %v429, 4
    %v431 = vmax.f32 %v429, %v430
    %v432 = vrot.slane %v431, 2
    %v433 = vmax.f32 %v431, %v432
    %v434 = vrot.slane %v433, 1
    %v435 = vmax.f32 %v433, %v434
    %vm436 = vcmp.eq.s32.totalorder %v87, 6
    %vm437 = vmand %vm135, %vm436
    %v438 = vsel %vm437, %v435, %v388
    %s439 = sld [smem:[#allocation7 + $0x23]]
    %s440 = sld [smem:[#allocation7 + $0x24]]
    %s441 = sld [smem:[#allocation7 + $0x25]]
    %s442 = sld [smem:[#allocation7 + $0x26]]
    %s443 = ssub.f32 %s441, %s439
    %s444 = sadd.f32 %s443, 1.0
    %s445 = ssub.f32 %s442, %s440
    %s446 = sadd.f32 %s445, 1.0
    %s447 = smul.f32 %s444, %s446
    %p448 = scmp.eq.f32.partialorder %s444, 1.0
    %p449 = scmp.eq.f32.partialorder %s446, 1.0
    %p450 = pnand %p448, %p449
    %p451 = pneg %p450
    %v452 = vstv %s441
    %v453 = vmin.f32 %v62, %v452
    %v454 = vstv %s439
    %v455 = vmax.f32 %v58, %v454
    %v456 = vsub.f32 %v453, %v455
    %v457 = vadd.f32 %v456, 1.0
    %v458 = vmax.f32 %v457, 0.0
    %v459 = vstv %s442
    %v460 = vmin.f32 %v64, %v459
    %v461 = vstv %s440
    %v462 = vmax.f32 %v60, %v461
    %v463 = vsub.f32 %v460, %v462
    %v464 = vadd.f32 %v463, 1.0
    %v465 = vmax.f32 %v464, 0.0
    %v466 = vmul.f32 %v458, %v465
    %v467 = vstv %s447
    %v468 = vadd.f32 %v80, %v467
    %v469 = vsub.f32 %v468, %v466
    %v470 = vrcp.pop %v469
    %v471 = vmul.f32 %v466, %v470
    %s472 = scalar_select %p451, 1, 0
    %v473 = vstv %s472
    %vm474 = vcmp.eq.s32.totalorder %v473, 1
    %v475 = vsel %vm474, 0.0, %v471
    %v476 = vsel %vm83, -1.0, %v475
    %v477 = vsel %vm75, %v476, -1e+30
    %478 = vmax.xlane.f32.xlu0 %v477
    %v479 = vpop.xlane.xlu0 %478
    %v480 = vrot.slane %v479, 4
    %v481 = vmax.f32 %v479, %v480
    %v482 = vrot.slane %v481, 2
    %v483 = vmax.f32 %v481, %v482
    %v484 = vrot.slane %v483, 1
    %v485 = vmax.f32 %v483, %v484
    %vm486 = vcmp.eq.s32.totalorder %v87, 7
    %vm487 = vmand %vm135, %vm486
    %v488 = vsel %vm487, %v485, %v438
    %s489 = sld [smem:[#allocation7 + $0x28]]
    %s490 = sld [smem:[#allocation7 + $0x29]]
    %s491 = sld [smem:[#allocation7 + $0x2a]]
    %s492 = sld [smem:[#allocation7 + $0x2b]]
    %s493 = ssub.f32 %s491, %s489
    %s494 = sadd.f32 %s493, 1.0
    %s495 = ssub.f32 %s492, %s490
    %s496 = sadd.f32 %s495, 1.0
    %s497 = smul.f32 %s494, %s496
    %p498 = scmp.eq.f32.partialorder %s494, 1.0
    %p499 = scmp.eq.f32.partialorder %s496, 1.0
    %p500 = pnand %p498, %p499
    %p501 = pneg %p500
    %v502 = vstv %s491
    %v503 = vmin.f32 %v62, %v502
    %v504 = vstv %s489
    %v505 = vmax.f32 %v58, %v504
    %v506 = vsub.f32 %v503, %v505
    %v507 = vadd.f32 %v506, 1.0
    %v508 = vmax.f32 %v507, 0.0
    %v509 = vstv %s492
    %v510 = vmin.f32 %v64, %v509
    %v511 = vstv %s490
    %v512 = vmax.f32 %v60, %v511
    %v513 = vsub.f32 %v510, %v512
    %v514 = vadd.f32 %v513, 1.0
    %v515 = vmax.f32 %v514, 0.0
    %v516 = vmul.f32 %v508, %v515
    %v517 = vstv %s497
    %v518 = vadd.f32 %v80, %v517
    %v519 = vsub.f32 %v518, %v516
    %v520 = vrcp.pop %v519
    %v521 = vmul.f32 %v516, %v520
    %s522 = scalar_select %p501, 1, 0
    %v523 = vstv %s522
    %vm524 = vcmp.eq.s32.totalorder %v523, 1
    %v525 = vsel %vm524, 0.0, %v521
    %v526 = vsel %vm83, -1.0, %v525
    %v527 = vsel %vm75, %v526, -1e+30
    %528 = vmax.xlane.f32.xlu0 %v527
    %v529 = vpop.xlane.xlu0 %528
    %v530 = vrot.slane %v529, 4
    %v531 = vmax.f32 %v529, %v530
    %v532 = vrot.slane %v531, 2
    %v533 = vmax.f32 %v531, %v532
    %v534 = vrot.slane %v533, 1
    %v535 = vmax.f32 %v533, %v534
    %vm536 = vcmp.eq.s32.totalorder %v85, 1
    %vm537 = vmand %vm536, %vm136
    %v538 = vsel %vm537, %v535, %v488
    %s539 = sld [smem:[#allocation7 + $0x2d]]
    %s540 = sld [smem:[#allocation7 + $0x2e]]
    %s541 = sld [smem:[#allocation7 + $0x2f]]
    %s542 = sld [smem:[#allocation7 + $0x30]]
    %s543 = ssub.f32 %s541, %s539
    %s544 = sadd.f32 %s543, 1.0
    %s545 = ssub.f32 %s542, %s540
    %s546 = sadd.f32 %s545, 1.0
    %s547 = smul.f32 %s544, %s546
    %p548 = scmp.eq.f32.partialorder %s544, 1.0
    %p549 = scmp.eq.f32.partialorder %s546, 1.0
    %p550 = pnand %p548, %p549
    %p551 = pneg %p550
    %v552 = vstv %s541
    %v553 = vmin.f32 %v62, %v552
    %v554 = vstv %s539
    %v555 = vmax.f32 %v58, %v554
    %v556 = vsub.f32 %v553, %v555
    %v557 = vadd.f32 %v556, 1.0
    %v558 = vmax.f32 %v557, 0.0
    %v559 = vstv %s542
    %v560 = vmin.f32 %v64, %v559
    %v561 = vstv %s540
    %v562 = vmax.f32 %v60, %v561
    %v563 = vsub.f32 %v560, %v562
    %v564 = vadd.f32 %v563, 1.0
    %v565 = vmax.f32 %v564, 0.0
    %v566 = vmul.f32 %v558, %v565
    %v567 = vstv %s547
    %v568 = vadd.f32 %v80, %v567
    %v569 = vsub.f32 %v568, %v566
    %v570 = vrcp.pop %v569
    %v571 = vmul.f32 %v566, %v570
    %s572 = scalar_select %p551, 1, 0
    %v573 = vstv %s572
    %vm574 = vcmp.eq.s32.totalorder %v573, 1
    %v575 = vsel %vm574, 0.0, %v571
    %v576 = vsel %vm83, -1.0, %v575
    %v577 = vsel %vm75, %v576, -1e+30
    %578 = vmax.xlane.f32.xlu0 %v577
    %v579 = vpop.xlane.xlu0 %578
    %v580 = vrot.slane %v579, 4
    %v581 = vmax.f32 %v579, %v580
    %v582 = vrot.slane %v581, 2
    %v583 = vmax.f32 %v581, %v582
    %v584 = vrot.slane %v583, 1
    %v585 = vmax.f32 %v583, %v584
    %vm586 = vmand %vm536, %vm186
    %v587 = vsel %vm586, %v585, %v538
    %s588 = sld [smem:[#allocation7 + $0x32]]
    %s589 = sld [smem:[#allocation7 + $0x33]]
    %s590 = sld [smem:[#allocation7 + $0x34]]
    %s591 = sld [smem:[#allocation7 + $0x35]]
    %s592 = ssub.f32 %s590, %s588
    %s593 = sadd.f32 %s592, 1.0
    %s594 = ssub.f32 %s591, %s589
    %s595 = sadd.f32 %s594, 1.0
    %s596 = smul.f32 %s593, %s595
    %p597 = scmp.eq.f32.partialorder %s593, 1.0
    %p598 = scmp.eq.f32.partialorder %s595, 1.0
    %p599 = pnand %p597, %p598
    %p600 = pneg %p599
    %v601 = vstv %s590
    %v602 = vmin.f32 %v62, %v601
    %v603 = vstv %s588
    %v604 = vmax.f32 %v58, %v603
    %v605 = vsub.f32 %v602, %v604
    %v606 = vadd.f32 %v605, 1.0
    %v607 = vmax.f32 %v606, 0.0
    %v608 = vstv %s591
    %v609 = vmin.f32 %v64, %v608
    %v610 = vstv %s589
    %v611 = vmax.f32 %v60, %v610
    %v612 = vsub.f32 %v609, %v611
    %v613 = vadd.f32 %v612, 1.0
    %v614 = vmax.f32 %v613, 0.0
    %v615 = vmul.f32 %v607, %v614
    %v616 = vstv %s596
    %v617 = vadd.f32 %v80, %v616
    %v618 = vsub.f32 %v617, %v615
    %v619 = vrcp.pop %v618
    %v620 = vmul.f32 %v615, %v619
    %s621 = scalar_select %p600, 1, 0
    %v622 = vstv %s621
    %vm623 = vcmp.eq.s32.totalorder %v622, 1
    %v624 = vsel %vm623, 0.0, %v620
    %v625 = vsel %vm83, -1.0, %v624
    %v626 = vsel %vm75, %v625, -1e+30
    %627 = vmax.xlane.f32.xlu0 %v626
    %v628 = vpop.xlane.xlu0 %627
    %v629 = vrot.slane %v628, 4
    %v630 = vmax.f32 %v628, %v629
    %v631 = vrot.slane %v630, 2
    %v632 = vmax.f32 %v630, %v631
    %v633 = vrot.slane %v632, 1
    %v634 = vmax.f32 %v632, %v633
    %vm635 = vmand %vm536, %vm236
    %v636 = vsel %vm635, %v634, %v587
    %s637 = sld [smem:[#allocation7 + $0x37]]
    %s638 = sld [smem:[#allocation7 + $0x38]]
    %s639 = sld [smem:[#allocation7 + $0x39]]
    %s640 = sld [smem:[#allocation7 + $0x3a]]
    %s641 = ssub.f32 %s639, %s637
    %s642 = sadd.f32 %s641, 1.0
    %s643 = ssub.f32 %s640, %s638
    %s644 = sadd.f32 %s643, 1.0
    %s645 = smul.f32 %s642, %s644
    %p646 = scmp.eq.f32.partialorder %s642, 1.0
    %p647 = scmp.eq.f32.partialorder %s644, 1.0
    %p648 = pnand %p646, %p647
    %p649 = pneg %p648
    %v650 = vstv %s639
    %v651 = vmin.f32 %v62, %v650
    %v652 = vstv %s637
    %v653 = vmax.f32 %v58, %v652
    %v654 = vsub.f32 %v651, %v653
    %v655 = vadd.f32 %v654, 1.0
    %v656 = vmax.f32 %v655, 0.0
    %v657 = vstv %s640
    %v658 = vmin.f32 %v64, %v657
    %v659 = vstv %s638
    %v660 = vmax.f32 %v60, %v659
    %v661 = vsub.f32 %v658, %v660
    %v662 = vadd.f32 %v661, 1.0
    %v663 = vmax.f32 %v662, 0.0
    %v664 = vmul.f32 %v656, %v663
    %v665 = vstv %s645
    %v666 = vadd.f32 %v80, %v665
    %v667 = vsub.f32 %v666, %v664
    %v668 = vrcp.pop %v667
    %v669 = vmul.f32 %v664, %v668
    %s670 = scalar_select %p649, 1, 0
    %v671 = vstv %s670
    %vm672 = vcmp.eq.s32.totalorder %v671, 1
    %v673 = vsel %vm672, 0.0, %v669
    %v674 = vsel %vm83, -1.0, %v673
    %v675 = vsel %vm75, %v674, -1e+30
    %676 = vmax.xlane.f32.xlu0 %v675
    %v677 = vpop.xlane.xlu0 %676
    %v678 = vrot.slane %v677, 4
    %v679 = vmax.f32 %v677, %v678
    %v680 = vrot.slane %v679, 2
    %v681 = vmax.f32 %v679, %v680
    %v682 = vrot.slane %v681, 1
    %v683 = vmax.f32 %v681, %v682
    %vm684 = vmand %vm536, %vm286
    %v685 = vsel %vm684, %v683, %v636
    %s686 = sld [smem:[#allocation7 + $0x3c]]
    %s687 = sld [smem:[#allocation7 + $0x3d]]
    %s688 = sld [smem:[#allocation7 + $0x3e]]
    %s689 = sld [smem:[#allocation7 + $0x3f]]
    %s690 = ssub.f32 %s688, %s686
    %s691 = sadd.f32 %s690, 1.0
    %s692 = ssub.f32 %s689, %s687
    %s693 = sadd.f32 %s692, 1.0
    %s694 = smul.f32 %s691, %s693
    %p695 = scmp.eq.f32.partialorder %s691, 1.0
    %p696 = scmp.eq.f32.partialorder %s693, 1.0
    %p697 = pnand %p695, %p696
    %p698 = pneg %p697
    %v699 = vstv %s688
    %v700 = vmin.f32 %v62, %v699
    %v701 = vstv %s686
    %v702 = vmax.f32 %v58, %v701
    %v703 = vsub.f32 %v700, %v702
    %v704 = vadd.f32 %v703, 1.0
    %v705 = vmax.f32 %v704, 0.0
    %v706 = vstv %s689
    %v707 = vmin.f32 %v64, %v706
    %v708 = vstv %s687
    %v709 = vmax.f32 %v60, %v708
    %v710 = vsub.f32 %v707, %v709
    %v711 = vadd.f32 %v710, 1.0
    %v712 = vmax.f32 %v711, 0.0
    %v713 = vmul.f32 %v705, %v712
    %v714 = vstv %s694
    %v715 = vadd.f32 %v80, %v714
    %v716 = vsub.f32 %v715, %v713
    %v717 = vrcp.pop %v716
    %v718 = vmul.f32 %v713, %v717
    %s719 = scalar_select %p698, 1, 0
    %v720 = vstv %s719
    %vm721 = vcmp.eq.s32.totalorder %v720, 1
    %v722 = vsel %vm721, 0.0, %v718
    %v723 = vsel %vm83, -1.0, %v722
    %v724 = vsel %vm75, %v723, -1e+30
    %725 = vmax.xlane.f32.xlu0 %v724
    %v726 = vpop.xlane.xlu0 %725
    %v727 = vrot.slane %v726, 4
    %v728 = vmax.f32 %v726, %v727
    %v729 = vrot.slane %v728, 2
    %v730 = vmax.f32 %v728, %v729
    %v731 = vrot.slane %v730, 1
    %v732 = vmax.f32 %v730, %v731
    %vm733 = vmand %vm536, %vm336
    %v734 = vsel %vm733, %v732, %v685
    %s735 = sld [smem:[#allocation7 + $0x41]]
    %s736 = sld [smem:[#allocation7 + $0x42]]
    %s737 = sld [smem:[#allocation7 + $0x43]]
    %s738 = sld [smem:[#allocation7 + $0x44]]
    %s739 = ssub.f32 %s737, %s735
    %s740 = sadd.f32 %s739, 1.0
    %s741 = ssub.f32 %s738, %s736
    %s742 = sadd.f32 %s741, 1.0
    %s743 = smul.f32 %s740, %s742
    %p744 = scmp.eq.f32.partialorder %s740, 1.0
    %p745 = scmp.eq.f32.partialorder %s742, 1.0
    %p746 = pnand %p744, %p745
    %p747 = pneg %p746
    %v748 = vstv %s737
    %v749 = vmin.f32 %v62, %v748
    %v750 = vstv %s735
    %v751 = vmax.f32 %v58, %v750
    %v752 = vsub.f32 %v749, %v751
    %v753 = vadd.f32 %v752, 1.0
    %v754 = vmax.f32 %v753, 0.0
    %v755 = vstv %s738
    %v756 = vmin.f32 %v64, %v755
    %v757 = vstv %s736
    %v758 = vmax.f32 %v60, %v757
    %v759 = vsub.f32 %v756, %v758
    %v760 = vadd.f32 %v759, 1.0
    %v761 = vmax.f32 %v760, 0.0
    %v762 = vmul.f32 %v754, %v761
    %v763 = vstv %s743
    %v764 = vadd.f32 %v80, %v763
    %v765 = vsub.f32 %v764, %v762
    %v766 = vrcp.pop %v765
    %v767 = vmul.f32 %v762, %v766
    %s768 = scalar_select %p747, 1, 0
    %v769 = vstv %s768
    %vm770 = vcmp.eq.s32.totalorder %v769, 1
    %v771 = vsel %vm770, 0.0, %v767
    %v772 = vsel %vm83, -1.0, %v771
    %v773 = vsel %vm75, %v772, -1e+30
    %774 = vmax.xlane.f32.xlu0 %v773
    %v775 = vpop.xlane.xlu0 %774
    %v776 = vrot.slane %v775, 4
    %v777 = vmax.f32 %v775, %v776
    %v778 = vrot.slane %v777, 2
    %v779 = vmax.f32 %v777, %v778
    %v780 = vrot.slane %v779, 1
    %v781 = vmax.f32 %v779, %v780
    %vm782 = vmand %vm536, %vm386
    %v783 = vsel %vm782, %v781, %v734
    %s784 = sld [smem:[#allocation7 + $0x46]]
    %s785 = sld [smem:[#allocation7 + $0x47]]
    %s786 = sld [smem:[#allocation7 + $0x48]]
    %s787 = sld [smem:[#allocation7 + $0x49]]
    %s788 = ssub.f32 %s786, %s784
    %s789 = sadd.f32 %s788, 1.0
    %s790 = ssub.f32 %s787, %s785
    %s791 = sadd.f32 %s790, 1.0
    %s792 = smul.f32 %s789, %s791
    %p793 = scmp.eq.f32.partialorder %s789, 1.0
    %p794 = scmp.eq.f32.partialorder %s791, 1.0
    %p795 = pnand %p793, %p794
    %p796 = pneg %p795
    %v797 = vstv %s786
    %v798 = vmin.f32 %v62, %v797
    %v799 = vstv %s784
    %v800 = vmax.f32 %v58, %v799
    %v801 = vsub.f32 %v798, %v800
    %v802 = vadd.f32 %v801, 1.0
    %v803 = vmax.f32 %v802, 0.0
    %v804 = vstv %s787
    %v805 = vmin.f32 %v64, %v804
    %v806 = vstv %s785
    %v807 = vmax.f32 %v60, %v806
    %v808 = vsub.f32 %v805, %v807
    %v809 = vadd.f32 %v808, 1.0
    %v810 = vmax.f32 %v809, 0.0
    %v811 = vmul.f32 %v803, %v810
    %v812 = vstv %s792
    %v813 = vadd.f32 %v80, %v812
    %v814 = vsub.f32 %v813, %v811
    %v815 = vrcp.pop %v814
    %v816 = vmul.f32 %v811, %v815
    %s817 = scalar_select %p796, 1, 0
    %v818 = vstv %s817
    %vm819 = vcmp.eq.s32.totalorder %v818, 1
    %v820 = vsel %vm819, 0.0, %v816
    %v821 = vsel %vm83, -1.0, %v820
    %v822 = vsel %vm75, %v821, -1e+30
    %823 = vmax.xlane.f32.xlu0 %v822
    %v824 = vpop.xlane.xlu0 %823
    %v825 = vrot.slane %v824, 4
    %v826 = vmax.f32 %v824, %v825
    %v827 = vrot.slane %v826, 2
    %v828 = vmax.f32 %v826, %v827
    %v829 = vrot.slane %v828, 1
    %v830 = vmax.f32 %v828, %v829
    %vm831 = vmand %vm536, %vm436
    %v832 = vsel %vm831, %v830, %v783
    %s833 = sld [smem:[#allocation7 + $0x4b]]
    %s834 = sld [smem:[#allocation7 + $0x4c]]
    %s835 = sld [smem:[#allocation7 + $0x4d]]
    %s836 = sld [smem:[#allocation7 + $0x4e]]
    %s837 = ssub.f32 %s835, %s833
    %s838 = sadd.f32 %s837, 1.0
    %s839 = ssub.f32 %s836, %s834
    %s840 = sadd.f32 %s839, 1.0
    %s841 = smul.f32 %s838, %s840
    %p842 = scmp.eq.f32.partialorder %s838, 1.0
    %p843 = scmp.eq.f32.partialorder %s840, 1.0
    %p844 = pnand %p842, %p843
    %p845 = pneg %p844
    %v846 = vstv %s835
    %v847 = vmin.f32 %v62, %v846
    %v848 = vstv %s833
    %v849 = vmax.f32 %v58, %v848
    %v850 = vsub.f32 %v847, %v849
    %v851 = vadd.f32 %v850, 1.0
    %v852 = vmax.f32 %v851, 0.0
    %v853 = vstv %s836
    %v854 = vmin.f32 %v64, %v853
    %v855 = vstv %s834
    %v856 = vmax.f32 %v60, %v855
    %v857 = vsub.f32 %v854, %v856
    %v858 = vadd.f32 %v857, 1.0
    %v859 = vmax.f32 %v858, 0.0
    %v860 = vmul.f32 %v852, %v859
    %v861 = vstv %s841
    %v862 = vadd.f32 %v80, %v861
    %v863 = vsub.f32 %v862, %v860
    %v864 = vrcp.pop %v863
    %v865 = vmul.f32 %v860, %v864
    %s866 = scalar_select %p845, 1, 0
    %v867 = vstv %s866
    %vm868 = vcmp.eq.s32.totalorder %v867, 1
    %v869 = vsel %vm868, 0.0, %v865
    %v870 = vsel %vm83, -1.0, %v869
    %v871 = vsel %vm75, %v870, -1e+30
    %872 = vmax.xlane.f32.xlu0 %v871
    %v873 = vpop.xlane.xlu0 %872
    %v874 = vrot.slane %v873, 4
    %v875 = vmax.f32 %v873, %v874
    %v876 = vrot.slane %v875, 2
    %v877 = vmax.f32 %v875, %v876
    %v878 = vrot.slane %v877, 1
    %v879 = vmax.f32 %v877, %v878
    %vm880 = vmand %vm536, %vm486
    %v881 = vsel %vm880, %v879, %v832
    %v882 = vld [vmem:[#allocation9] sm:$0x3]
    %v883 = vmax.f32 %v882, %v881
    %vm884 = vcmask 58368
    %885 = vst.msk [vmem:[#allocation9] sm:$0x3] %vm884, %v883
    // Predicated region
    $region30: #{tpu_custom_call.1} parent=1 // pred_check
      _
    $region31: #{tpu_custom_call.1} parent=1 // pred_check_branch
      %887 = sbr.rel (0) target = $region33
    $region32: #{tpu_custom_call.1} parent=1 // pred_region
      %s889 = ssub.s32 32, 32
      %890 = vsyncadd [#allocation4], %s889
      %s892 = sshll.u32 [#allocation9], 4
      %s893 = int_to_ptr.vmem [resolvable:$true] %s892
      %895 = dma.vmem_to_hbm [thread:$0]  %s893, 32, %s3, [#allocation4]
    $region33: #{tpu_custom_call.1} parent=1 // pred_fallthru
      _
    // Predicated region
    $region34: #{tpu_custom_call.1} parent=1 // pred_check
      _
    $region35: #{tpu_custom_call.1} parent=1 // pred_check_branch
      %897 = sbr.rel (0) target = $region37
    $region36: #{tpu_custom_call.1} parent=1 // pred_region
      %898 = dma.done [#allocation4], 32
    $region37: #{tpu_custom_call.1} parent=1 // pred_fallthru
      _
    %899 = vsyncpa [#allocation3], 1
    %900 = vsyncpa [#allocation4], 1
    %901 = vsyncpa [#allocation5], 1
    %902 = vsyncpa [#allocation6], 1

</llo_original>
